<compile_context>
chip_gen: v7x
topology: tpu7x:2x2x1
jax: 0.10.0
libtpu: 0.0.40
codegen_flags: <defaults>
</compile_context>

<pallas_src>
import jax
import jax.numpy as jnp
from jax.experimental import pallas as pl
from jax.experimental.pallas import tpu as pltpu

LANE = 128       # pad K and output-channel dims to multiples of the lane width
SUBLANE = 16     # row-tile granularity safe for both f32 and bf16 operands
MAX_TK = 1024    # max K-tile; larger K is split over the reduction grid axis


def _round_up(x, m):
    return ((x + m - 1) // m) * m


def _pick_tile_m(m):
    """Rows per M-tile: multiple of 16, capped at 1024, and split into >= 2
    tiles when M is large enough so the 'parallel' grid axis can feed both
    TensorCores on v7x."""
    if m <= 256:
        return _round_up(m, SUBLANE)
    half = _round_up((m + 1) // 2, SUBLANE)
    return min(1024, half)


# ----------------------------------------------------------------------------
# Pallas kernels
# ----------------------------------------------------------------------------
def _conv_relu_kernel(p_ref, w_ref, b_ref, o_ref, acc_ref):
    # bf16 operands on the MXU, f32 accumulation over the K grid axis.
    kk = pl.program_id(1)

    @pl.when(kk == 0)
    def _():
        acc_ref[...] = jnp.zeros_like(acc_ref)

    acc_ref[...] += jnp.dot(p_ref[...], w_ref[...],
                            preferred_element_type=jnp.float32)

    @pl.when(kk == pl.num_programs(1) - 1)
    def _():
        o_ref[...] = jnp.maximum(acc_ref[...] + b_ref[...], 0.0).astype(o_ref.dtype)


def _conv_relu_style_kernel(p_ref, w_ref, b_ref, ws_ref, bs_ref, o_ref, acc_ref):
    # down2 conv (+ K reduction) + bias + ReLU, then the 1x1 style conv as an
    # epilogue on the VMEM-resident activation tile (no HBM round trip).
    kk = pl.program_id(1)

    @pl.when(kk == 0)
    def _():
        acc_ref[...] = jnp.zeros_like(acc_ref)

    acc_ref[...] += jnp.dot(p_ref[...], w_ref[...],
                            preferred_element_type=jnp.float32)

    @pl.when(kk == pl.num_programs(1) - 1)
    def _():
        act = jnp.maximum(acc_ref[...] + b_ref[...], 0.0)        # f32 activation
        sty = jnp.dot(act.astype(ws_ref.dtype), ws_ref[...],
                      preferred_element_type=jnp.float32)
        o_ref[...] = (sty + bs_ref[...]).astype(o_ref.dtype)


def _launch(kernel, patches, w, b, extras, out_width, out_dtype, acc_width):
    """patches: (M, Kp) bf16; w: (Kp, Cmid) bf16 tiled along K; b/extras resident."""
    m, kp = patches.shape
    tk = min(kp, MAX_TK)
    nk = kp // tk
    tm = _pick_tile_m(m)
    m_pad = _round_up(m, tm)
    if m_pad != m:
        patches = jnp.pad(patches, ((0, m_pad - m), (0, 0)))

    in_specs = [
        pl.BlockSpec((tm, tk), lambda i, kk: (i, kk)),          # patch tile
        pl.BlockSpec((tk, w.shape[1]), lambda i, kk: (kk, 0)),  # weight K-slab
        pl.BlockSpec(b.shape, lambda i, kk: (0, 0)),            # bias (resident)
    ]
    in_specs += [pl.BlockSpec(c.shape, lambda i, kk: (0, 0)) for c in extras]

    out = pl.pallas_call(
        kernel,
        out_shape=jax.ShapeDtypeStruct((m_pad, out_width), out_dtype),
        grid=(m_pad // tm, nk),                                 # reduction last
        in_specs=in_specs,
        out_specs=pl.BlockSpec((tm, out_width), lambda i, kk: (i, 0)),
        scratch_shapes=[pltpu.VMEM((tm, acc_width), jnp.float32)],
        compiler_params=pltpu.CompilerParams(
            dimension_semantics=("parallel", "arbitrary"),
            vmem_limit_bytes=32 * 1024 * 1024,
        ),
    )(patches, w, b, *extras)
    return out, m


# ----------------------------------------------------------------------------
# Plain-JAX glue: NHWC reflect-pad + im2col and weight/bias padding
# ----------------------------------------------------------------------------
def _im2col_nhwc(x, kh, kw, stride, padding):
    """x: (N, H, W, C) -> patches (N*Ho*Wo, kh*kw*C) in (kh, kw, C) order."""
    n, h, w, c = x.shape
    if padding > 0:
        x = jnp.pad(x, ((0, 0), (padding, padding), (padding, padding), (0, 0)),
                    mode="reflect")
    hp, wp = h + 2 * padding, w + 2 * padding
    ho = (hp - kh) // stride + 1
    wo = (wp - kw) // stride + 1
    cols = []
    for i in range(kh):
        for j in range(kw):
            cols.append(x[:, i:i + (ho - 1) * stride + 1:stride,
                             j:j + (wo - 1) * stride + 1:stride, :])
    p = jnp.stack(cols, axis=0)                         # (kh*kw, N, Ho, Wo, C)
    p = p.transpose(1, 2, 3, 0, 4).reshape(n * ho * wo, kh * kw * c)
    return p, (n, ho, wo)


def _prep_weight(weight, bias, kp, np_):
    """weight: (Cout, Cin, kh, kw) -> (kp, np_) bf16; bias -> (1, np_) f32."""
    cout, cin, kh, kw = weight.shape
    wm = weight.transpose(2, 3, 1, 0).reshape(kh * kw * cin, cout)
    wm = jnp.pad(wm, ((0, kp - wm.shape[0]), (0, np_ - cout))).astype(jnp.bfloat16)
    bm = jnp.pad(bias.reshape(1, cout).astype(jnp.float32),
                 ((0, 0), (0, np_ - cout)))
    return wm, bm


def _pad_k(k):
    kp = _round_up(k, LANE)
    tk = min(kp, MAX_TK)
    return _round_up(kp, tk)


# ----------------------------------------------------------------------------
# Conv2dBlock (norm='none', activ='relu') layers
# ----------------------------------------------------------------------------
def _conv_layer(x, weight, bias, *, stride, padding):
    cout, _, kh, kw = weight.shape
    patches, (n, ho, wo) = _im2col_nhwc(x, kh, kw, stride, padding)
    k = patches.shape[1]
    kp = _pad_k(k)
    np_ = _round_up(cout, LANE)
    patches = jnp.pad(patches, ((0, 0), (0, kp - k))).astype(jnp.bfloat16)
    wm, bm = _prep_weight(weight, bias, kp, np_)
    out, m = _launch(_conv_relu_kernel, patches, wm, bm, [],
                     np_, jnp.bfloat16, np_)
    return out[:m, :cout].reshape(n, ho, wo, cout)


def _conv_layer_fused_style(x, w_conv, b_conv, w_style, b_style, *, stride, padding):
    cout, _, kh, kw = w_conv.shape
    style_dim = w_style.shape[0]
    patches, (n, ho, wo) = _im2col_nhwc(x, kh, kw, stride, padding)
    k = patches.shape[1]
    kp = _pad_k(k)
    np_mid = _round_up(cout, LANE)
    np_out = _round_up(style_dim, LANE)
    patches = jnp.pad(patches, ((0, 0), (0, kp - k))).astype(jnp.bfloat16)
    wm, bm = _prep_weight(w_conv, b_conv, kp, np_mid)
    wsm, bsm = _prep_weight(w_style, b_style, np_mid, np_out)
    out, m = _launch(_conv_relu_style_kernel, patches, wm, bm, [wsm, bsm],
                     np_out, jnp.float32, np_mid)
    return out[:m, :style_dim].reshape(n, ho, wo, style_dim)


# ----------------------------------------------------------------------------
# StyleEncoder forward
# ----------------------------------------------------------------------------
def style_encoder_forward(x_nchw, params):
    # Single layout conversion at the boundary; NHWC bf16 between layers.
    x = x_nchw.transpose(0, 2, 3, 1).astype(jnp.bfloat16)
    # conv_first: 7x7 / s1 / p3 / relu
    x = _conv_layer(x, params["w1"], params["b1"], stride=1, padding=3)
    # down1: 4x4 / s2 / p1 / relu
    x = _conv_layer(x, params["w2"], params["b2"], stride=2, padding=1)
    # down2: 4x4 / s2 / p1 / relu  (+ fused 1x1 style conv, no activation)
    style = _conv_layer_fused_style(x, params["w3"], params["b3"],
                                    params["w4"], params["b4"],
                                    stride=2, padding=1)
    return style.transpose(0, 3, 1, 2)          # back to NCHW, f32


# ----------------------------------------------------------------------------
# Pure-JAX f32 reference (for correctness checking only)
# ----------------------------------------------------------------------------
def _reference_forward(x_nchw, params):
    x = x_nchw.transpose(0, 2, 3, 1)

    def conv(x, w, b, stride, padding, relu=True):
        if padding > 0:
            x = jnp.pad(x, ((0, 0), (padding, padding), (padding, padding), (0, 0)),
                        mode="reflect")
        y = jax.lax.conv_general_dilated(
            x, jnp.transpose(w, (2, 3, 1, 0)),
            window_strides=(stride, stride), padding="VALID",
            dimension_numbers=("NHWC", "HWIO", "NHWC"))
        y = y + b.reshape(1, 1, 1, -1)
        return jnp.maximum(y, 0.0) if relu else y

    x = conv(x, params["w1"], params["b1"], 1, 3)
    x = conv(x, params["w2"], params["b2"], 2, 1)
    x = conv(x, params["w3"], params["b3"], 2, 1)
    x = conv(x, params["w4"], params["b4"], 1, 0, relu=False)
    return x.transpose(0, 3, 1, 2)


def init_params(key, input_dim, dim, style_dim):
    ks = jax.random.split(key, 8)

    def conv_init(kw_, kb_, cout, cin, kh, kkw):
        fan_in = cin * kh * kkw
        bound = 1.0 / (fan_in ** 0.5)
        w = jax.random.uniform(kw_, (cout, cin, kh, kkw), jnp.float32, -bound, bound)
        b = jax.random.uniform(kb_, (cout,), jnp.float32, -bound, bound)
        return w, b

    w1, b1 = conv_init(ks[0], ks[1], dim, input_dim, 7, 7)
    w2, b2 = conv_init(ks[2], ks[3], dim, dim, 4, 4)
    w3, b3 = conv_init(ks[4], ks[5], dim, dim, 4, 4)
    w4, b4 = conv_init(ks[6], ks[7], style_dim, dim, 1, 1)
    return dict(w1=w1, b1=b1, w2=w2, b2=b2, w3=w3, b3=b3, w4=w4, b4=b4)


if __name__ == "__main__":
    key = jax.random.PRNGKey(0)
    k_x, k_p = jax.random.split(key)

    # Small shapes: batch=2, input_dim=4, dim=16, style_dim=8, spatial=16
    batch, input_dim, dim, style_dim, spatial = 2, 4, 16, 8, 16
    x = jax.random.normal(k_x, (batch, input_dim, spatial, spatial), jnp.float32)
    params = init_params(k_p, input_dim, dim, style_dim)

    forward = jax.jit(style_encoder_forward)
    out = forward(x, params)
    out = jax.block_until_ready(out)

    # Expected output shape: (2, style_dim, spatial//4, spatial//4) = (2, 8, 4, 4)
    assert out.shape == (batch, style_dim, spatial // 4, spatial // 4), out.shape
    assert jnp.all(jnp.isfinite(out))

    # Cross-check against a pure-JAX f32 reference (bf16 MXU path -> loose tol).
    ref = jax.block_until_ready(_reference_forward(x, params))
    max_err = float(jnp.max(jnp.abs(out.astype(jnp.float32) - ref)))
    assert max_err < 5e-2, f"max abs err vs reference: {max_err}"

    print("KERNEL_OK")
</pallas_src>

<mosaic_0001>
module attributes {stable_mosaic.version = 11 : i64} {
  func.func @_conv_relu_kernel(%arg0: i32, %arg1: i32, %arg2: memref<256x256xbf16, #tpu.memory_space<vmem>>, %arg3: memref<256x128xbf16, #tpu.memory_space<vmem>>, %arg4: memref<1x128xf32, #tpu.memory_space<vmem>>, %arg5: memref<256x128xbf16, #tpu.memory_space<vmem>>, %arg6: memref<256x128xf32, #tpu.memory_space<vmem>>) attributes {dimension_semantics = [#tpu.dimension_semantics<parallel>, #tpu.dimension_semantics<arbitrary>], iteration_bounds = array<i64: 2, 1>, scalar_prefetch = 0 : i64, scratch_operands = 1 : i64, tpu.core_type = #tpu.core_type<tc>, window_params = [{transform_indices = @transform_0, window_bounds = array<i64: 256, 256>}, {transform_indices = @transform_1, window_bounds = array<i64: 256, 128>}, {pipeline_mode = #tpu.pipeline_mode<synchronous>, transform_indices = @transform_2, window_bounds = array<i64: 1, 128>}, {transform_indices = @transform_3, window_bounds = array<i64: 256, 128>}]} {
    %c0_i32 = arith.constant 0 : i32
    %0 = arith.cmpi eq, %arg1, %c0_i32 : i32
    %1 = arith.extui %0 : i1 to i32
    %c0_i32_0 = arith.constant 0 : i32
    %2 = arith.cmpi ne, %1, %c0_i32_0 : i32
    scf.if %2 {
      %cst_10 = arith.constant 0.000000e+00 : f32
      %12 = vector.broadcast %cst_10 : f32 to vector<256x128xf32>
      %c0_11 = arith.constant 0 : index
      %c0_12 = arith.constant 0 : index
      %13 = vector.load %arg6[%c0_11, %c0_12] : memref<256x128xf32, #tpu.memory_space<vmem>>, vector<256x128xf32>
      tpu.vector_store %arg6[%c0_11, %c0_12], %12 {strides = array<i32>} : memref<256x128xf32, #tpu.memory_space<vmem>>, vector<256x128xf32>,
    } else {
    }
    %c0 = arith.constant 0 : index
    %c0_1 = arith.constant 0 : index
    %3 = vector.load %arg6[%c0, %c0_1] : memref<256x128xf32, #tpu.memory_space<vmem>>, vector<256x128xf32>
    %c0_2 = arith.constant 0 : index
    %c0_3 = arith.constant 0 : index
    %4 = vector.load %arg2[%c0_2, %c0_3] : memref<256x256xbf16, #tpu.memory_space<vmem>>, vector<256x256xbf16>
    %c0_4 = arith.constant 0 : index
    %c0_5 = arith.constant 0 : index
    %5 = vector.load %arg3[%c0_4, %c0_5] : memref<256x128xbf16, #tpu.memory_space<vmem>>, vector<256x128xbf16>
    %cst = arith.constant dense<0.000000e+00> : vector<256x128xf32>
    %6 = tpu.matmul %4, %5, %cst {dimension_numbers = #tpu.dot_dimension_numbers<[1], [0], [0], [1], [0, 0, 1, 1], [], []>} : vector<256x256xbf16>, vector<256x128xbf16>, vector<256x128xf32> -> vector<256x128xf32>
    %7 = arith.addf %3, %6 : vector<256x128xf32>
    %c0_6 = arith.constant 0 : index
    %c0_7 = arith.constant 0 : index
    %8 = vector.load %arg6[%c0_6, %c0_7] : memref<256x128xf32, #tpu.memory_space<vmem>>, vector<256x128xf32>
    tpu.vector_store %arg6[%c0_6, %c0_7], %7 {strides = array<i32>} : memref<256x128xf32, #tpu.memory_space<vmem>>, vector<256x128xf32>,
    %c0_i32_8 = arith.constant 0 : i32
    %9 = arith.cmpi eq, %arg1, %c0_i32_8 : i32
    %10 = arith.extui %9 : i1 to i32
    %c0_i32_9 = arith.constant 0 : i32
    %11 = arith.cmpi ne, %10, %c0_i32_9 : i32
    scf.if %11 {
      %c0_10 = arith.constant 0 : index
      %c0_11 = arith.constant 0 : index
      %12 = vector.load %arg6[%c0_10, %c0_11] : memref<256x128xf32, #tpu.memory_space<vmem>>, vector<256x128xf32>
      %c0_12 = arith.constant 0 : index
      %c0_13 = arith.constant 0 : index
      %13 = vector.load %arg4[%c0_12, %c0_13] : memref<1x128xf32, #tpu.memory_space<vmem>>, vector<1x128xf32>
      %14 = vector.broadcast %13 : vector<1x128xf32> to vector<256x128xf32>
      %15 = arith.addf %12, %14 : vector<256x128xf32>
      %cst_14 = arith.constant 0.000000e+00 : f32
      %16 = vector.broadcast %cst_14 : f32 to vector<256x128xf32>
      %17 = arith.maximumf %15, %16 : vector<256x128xf32>
      %18 = arith.truncf %17 : vector<256x128xf32> to vector<256x128xbf16>
      %c0_15 = arith.constant 0 : index
      %c0_16 = arith.constant 0 : index
      %19 = vector.load %arg5[%c0_15, %c0_16] : memref<256x128xbf16, #tpu.memory_space<vmem>>, vector<256x128xbf16>
      tpu.vector_store %arg5[%c0_15, %c0_16], %18 {strides = array<i32>} : memref<256x128xbf16, #tpu.memory_space<vmem>>, vector<256x128xbf16>,
    } else {
    }
    return
  }
  func.func @transform_0(%arg0: i32, %arg1: i32) -> (i32, i32) {
    %c0_i32 = arith.constant 0 : i32
    return %arg0, %arg1 : i32, i32
  }
  func.func @transform_1(%arg0: i32, %arg1: i32) -> (i32, i32) {
    %c0_i32 = arith.constant 0 : i32
    %c0_i32_0 = arith.constant 0 : i32
    return %arg1, %c0_i32 : i32, i32
  }
  func.func @transform_2(%arg0: i32, %arg1: i32) -> (i32, i32) {
    %c0_i32 = arith.constant 0 : i32
    %c0_i32_0 = arith.constant 0 : i32
    %c0_i32_1 = arith.constant 0 : i32
    return %c0_i32, %c0_i32_0 : i32, i32
  }
  func.func @transform_3(%arg0: i32, %arg1: i32) -> (i32, i32) {
    %c0_i32 = arith.constant 0 : i32
    %c0_i32_0 = arith.constant 0 : i32
    return %arg0, %c0_i32 : i32, i32
  }
}

module attributes {stable_mosaic.version = 11 : i64} {
  func.func @_conv_relu_kernel(%arg0: i32, %arg1: i32, %arg2: memref<128x256xbf16, #tpu.memory_space<vmem>>, %arg3: memref<256x128xbf16, #tpu.memory_space<vmem>>, %arg4: memref<1x128xf32, #tpu.memory_space<vmem>>, %arg5: memref<128x128xbf16, #tpu.memory_space<vmem>>, %arg6: memref<128x128xf32, #tpu.memory_space<vmem>>) attributes {dimension_semantics = [#tpu.dimension_semantics<parallel>, #tpu.dimension_semantics<arbitrary>], iteration_bounds = array<i64: 1, 1>, scalar_prefetch = 0 : i64, scratch_operands = 1 : i64, tpu.core_type = #tpu.core_type<tc>, window_params = [{transform_indices = @transform_0, window_bounds = array<i64: 128, 256>}, {transform_indices = @transform_1, window_bounds = array<i64: 256, 128>}, {pipeline_mode = #tpu.pipeline_mode<synchronous>, transform_indices = @transform_2, window_bounds = array<i64: 1, 128>}, {transform_indices = @transform_3, window_bounds = array<i64: 128, 128>}]} {
    %c0_i32 = arith.constant 0 : i32
    %0 = arith.cmpi eq, %arg1, %c0_i32 : i32
    %1 = arith.extui %0 : i1 to i32
    %c0_i32_0 = arith.constant 0 : i32
    %2 = arith.cmpi ne, %1, %c0_i32_0 : i32
    scf.if %2 {
      %cst_10 = arith.constant 0.000000e+00 : f32
      %12 = vector.broadcast %cst_10 : f32 to vector<128x128xf32>
      %c0_11 = arith.constant 0 : index
      %c0_12 = arith.constant 0 : index
      %13 = vector.load %arg6[%c0_11, %c0_12] : memref<128x128xf32, #tpu.memory_space<vmem>>, vector<128x128xf32>
      tpu.vector_store %arg6[%c0_11, %c0_12], %12 {strides = array<i32>} : memref<128x128xf32, #tpu.memory_space<vmem>>, vector<128x128xf32>,
    } else {
    }
    %c0 = arith.constant 0 : index
    %c0_1 = arith.constant 0 : index
    %3 = vector.load %arg6[%c0, %c0_1] : memref<128x128xf32, #tpu.memory_space<vmem>>, vector<128x128xf32>
    %c0_2 = arith.constant 0 : index
    %c0_3 = arith.constant 0 : index
    %4 = vector.load %arg2[%c0_2, %c0_3] : memref<128x256xbf16, #tpu.memory_space<vmem>>, vector<128x256xbf16>
    %c0_4 = arith.constant 0 : index
    %c0_5 = arith.constant 0 : index
    %5 = vector.load %arg3[%c0_4, %c0_5] : memref<256x128xbf16, #tpu.memory_space<vmem>>, vector<256x128xbf16>
    %cst = arith.constant dense<0.000000e+00> : vector<128x128xf32>
    %6 = tpu.matmul %4, %5, %cst {dimension_numbers = #tpu.dot_dimension_numbers<[1], [0], [0], [1], [0, 0, 1, 1], [], []>} : vector<128x256xbf16>, vector<256x128xbf16>, vector<128x128xf32> -> vector<128x128xf32>
    %7 = arith.addf %3, %6 : vector<128x128xf32>
    %c0_6 = arith.constant 0 : index
    %c0_7 = arith.constant 0 : index
    %8 = vector.load %arg6[%c0_6, %c0_7] : memref<128x128xf32, #tpu.memory_space<vmem>>, vector<128x128xf32>
    tpu.vector_store %arg6[%c0_6, %c0_7], %7 {strides = array<i32>} : memref<128x128xf32, #tpu.memory_space<vmem>>, vector<128x128xf32>,
    %c0_i32_8 = arith.constant 0 : i32
    %9 = arith.cmpi eq, %arg1, %c0_i32_8 : i32
    %10 = arith.extui %9 : i1 to i32
    %c0_i32_9 = arith.constant 0 : i32
    %11 = arith.cmpi ne, %10, %c0_i32_9 : i32
    scf.if %11 {
      %c0_10 = arith.constant 0 : index
      %c0_11 = arith.constant 0 : index
      %12 = vector.load %arg6[%c0_10, %c0_11] : memref<128x128xf32, #tpu.memory_space<vmem>>, vector<128x128xf32>
      %c0_12 = arith.constant 0 : index
      %c0_13 = arith.constant 0 : index
      %13 = vector.load %arg4[%c0_12, %c0_13] : memref<1x128xf32, #tpu.memory_space<vmem>>, vector<1x128xf32>
      %14 = vector.broadcast %13 : vector<1x128xf32> to vector<128x128xf32>
      %15 = arith.addf %12, %14 : vector<128x128xf32>
      %cst_14 = arith.constant 0.000000e+00 : f32
      %16 = vector.broadcast %cst_14 : f32 to vector<128x128xf32>
      %17 = arith.maximumf %15, %16 : vector<128x128xf32>
      %18 = arith.truncf %17 : vector<128x128xf32> to vector<128x128xbf16>
      %c0_15 = arith.constant 0 : index
      %c0_16 = arith.constant 0 : index
      %19 = vector.load %arg5[%c0_15, %c0_16] : memref<128x128xbf16, #tpu.memory_space<vmem>>, vector<128x128xbf16>
      tpu.vector_store %arg5[%c0_15, %c0_16], %18 {strides = array<i32>} : memref<128x128xbf16, #tpu.memory_space<vmem>>, vector<128x128xbf16>,
    } else {
    }
    return
  }
  func.func @transform_0(%arg0: i32, %arg1: i32) -> (i32, i32) {
    %c0_i32 = arith.constant 0 : i32
    return %arg0, %arg1 : i32, i32
  }
  func.func @transform_1(%arg0: i32, %arg1: i32) -> (i32, i32) {
    %c0_i32 = arith.constant 0 : i32
    %c0_i32_0 = arith.constant 0 : i32
    return %arg1, %c0_i32 : i32, i32
  }
  func.func @transform_2(%arg0: i32, %arg1: i32) -> (i32, i32) {
    %c0_i32 = arith.constant 0 : i32
    %c0_i32_0 = arith.constant 0 : i32
    %c0_i32_1 = arith.constant 0 : i32
    return %c0_i32, %c0_i32_0 : i32, i32
  }
  func.func @transform_3(%arg0: i32, %arg1: i32) -> (i32, i32) {
    %c0_i32 = arith.constant 0 : i32
    %c0_i32_0 = arith.constant 0 : i32
    return %arg0, %c0_i32 : i32, i32
  }
}

module attributes {stable_mosaic.version = 11 : i64} {
  func.func @_conv_relu_style_kernel(%arg0: i32, %arg1: i32, %arg2: memref<32x256xbf16, #tpu.memory_space<vmem>>, %arg3: memref<256x128xbf16, #tpu.memory_space<vmem>>, %arg4: memref<1x128xf32, #tpu.memory_space<vmem>>, %arg5: memref<128x128xbf16, #tpu.memory_space<vmem>>, %arg6: memref<1x128xf32, #tpu.memory_space<vmem>>, %arg7: memref<32x128xf32, #tpu.memory_space<vmem>>, %arg8: memref<32x128xf32, #tpu.memory_space<vmem>>) attributes {dimension_semantics = [#tpu.dimension_semantics<parallel>, #tpu.dimension_semantics<arbitrary>], iteration_bounds = array<i64: 1, 1>, scalar_prefetch = 0 : i64, scratch_operands = 1 : i64, tpu.core_type = #tpu.core_type<tc>, window_params = [{transform_indices = @transform_0, window_bounds = array<i64: 32, 256>}, {transform_indices = @transform_1, window_bounds = array<i64: 256, 128>}, {pipeline_mode = #tpu.pipeline_mode<synchronous>, transform_indices = @transform_2, window_bounds = array<i64: 1, 128>}, {pipeline_mode = #tpu.pipeline_mode<synchronous>, transform_indices = @transform_3, window_bounds = array<i64: 128, 128>}, {pipeline_mode = #tpu.pipeline_mode<synchronous>, transform_indices = @transform_4, window_bounds = array<i64: 1, 128>}, {transform_indices = @transform_5, window_bounds = array<i64: 32, 128>}]} {
    %c0_i32 = arith.constant 0 : i32
    %0 = arith.cmpi eq, %arg1, %c0_i32 : i32
    %1 = arith.extui %0 : i1 to i32
    %c0_i32_0 = arith.constant 0 : i32
    %2 = arith.cmpi ne, %1, %c0_i32_0 : i32
    scf.if %2 {
      %cst_10 = arith.constant 0.000000e+00 : f32
      %12 = vector.broadcast %cst_10 : f32 to vector<32x128xf32>
      %c0_11 = arith.constant 0 : index
      %c0_12 = arith.constant 0 : index
      %13 = vector.load %arg8[%c0_11, %c0_12] : memref<32x128xf32, #tpu.memory_space<vmem>>, vector<32x128xf32>
      tpu.vector_store %arg8[%c0_11, %c0_12], %12 {strides = array<i32>} : memref<32x128xf32, #tpu.memory_space<vmem>>, vector<32x128xf32>,
    } else {
    }
    %c0 = arith.constant 0 : index
    %c0_1 = arith.constant 0 : index
    %3 = vector.load %arg8[%c0, %c0_1] : memref<32x128xf32, #tpu.memory_space<vmem>>, vector<32x128xf32>
    %c0_2 = arith.constant 0 : index
    %c0_3 = arith.constant 0 : index
    %4 = vector.load %arg2[%c0_2, %c0_3] : memref<32x256xbf16, #tpu.memory_space<vmem>>, vector<32x256xbf16>
    %c0_4 = arith.constant 0 : index
    %c0_5 = arith.constant 0 : index
    %5 = vector.load %arg3[%c0_4, %c0_5] : memref<256x128xbf16, #tpu.memory_space<vmem>>, vector<256x128xbf16>
    %cst = arith.constant dense<0.000000e+00> : vector<32x128xf32>
    %6 = tpu.matmul %4, %5, %cst {dimension_numbers = #tpu.dot_dimension_numbers<[1], [0], [0], [1], [0, 0, 1, 1], [], []>} : vector<32x256xbf16>, vector<256x128xbf16>, vector<32x128xf32> -> vector<32x128xf32>
    %7 = arith.addf %3, %6 : vector<32x128xf32>
    %c0_6 = arith.constant 0 : index
    %c0_7 = arith.constant 0 : index
    %8 = vector.load %arg8[%c0_6, %c0_7] : memref<32x128xf32, #tpu.memory_space<vmem>>, vector<32x128xf32>
    tpu.vector_store %arg8[%c0_6, %c0_7], %7 {strides = array<i32>} : memref<32x128xf32, #tpu.memory_space<vmem>>, vector<32x128xf32>,
    %c0_i32_8 = arith.constant 0 : i32
    %9 = arith.cmpi eq, %arg1, %c0_i32_8 : i32
    %10 = arith.extui %9 : i1 to i32
    %c0_i32_9 = arith.constant 0 : i32
    %11 = arith.cmpi ne, %10, %c0_i32_9 : i32
    scf.if %11 {
      %c0_10 = arith.constant 0 : index
      %c0_11 = arith.constant 0 : index
      %12 = vector.load %arg8[%c0_10, %c0_11] : memref<32x128xf32, #tpu.memory_space<vmem>>, vector<32x128xf32>
      %c0_12 = arith.constant 0 : index
      %c0_13 = arith.constant 0 : index
      %13 = vector.load %arg4[%c0_12, %c0_13] : memref<1x128xf32, #tpu.memory_space<vmem>>, vector<1x128xf32>
      %14 = vector.broadcast %13 : vector<1x128xf32> to vector<32x128xf32>
      %15 = arith.addf %12, %14 : vector<32x128xf32>
      %cst_14 = arith.constant 0.000000e+00 : f32
      %16 = vector.broadcast %cst_14 : f32 to vector<32x128xf32>
      %17 = arith.maximumf %15, %16 : vector<32x128xf32>
      %18 = arith.truncf %17 : vector<32x128xf32> to vector<32x128xbf16>
      %c0_15 = arith.constant 0 : index
      %c0_16 = arith.constant 0 : index
      %19 = vector.load %arg5[%c0_15, %c0_16] : memref<128x128xbf16, #tpu.memory_space<vmem>>, vector<128x128xbf16>
      %cst_17 = arith.constant dense<0.000000e+00> : vector<32x128xf32>
      %20 = tpu.matmul %18, %19, %cst_17 {dimension_numbers = #tpu.dot_dimension_numbers<[1], [0], [0], [1], [0, 0, 1, 1], [], []>} : vector<32x128xbf16>, vector<128x128xbf16>, vector<32x128xf32> -> vector<32x128xf32>
      %c0_18 = arith.constant 0 : index
      %c0_19 = arith.constant 0 : index
      %21 = vector.load %arg6[%c0_18, %c0_19] : memref<1x128xf32, #tpu.memory_space<vmem>>, vector<1x128xf32>
      %22 = vector.broadcast %21 : vector<1x128xf32> to vector<32x128xf32>
      %23 = arith.addf %20, %22 : vector<32x128xf32>
      %c0_20 = arith.constant 0 : index
      %c0_21 = arith.constant 0 : index
      %24 = vector.load %arg7[%c0_20, %c0_21] : memref<32x128xf32, #tpu.memory_space<vmem>>, vector<32x128xf32>
      tpu.vector_store %arg7[%c0_20, %c0_21], %23 {strides = array<i32>} : memref<32x128xf32, #tpu.memory_space<vmem>>, vector<32x128xf32>,
    } else {
    }
    return
  }
  func.func @transform_0(%arg0: i32, %arg1: i32) -> (i32, i32) {
    %c0_i32 = arith.constant 0 : i32
    return %arg0, %arg1 : i32, i32
  }
  func.func @transform_1(%arg0: i32, %arg1: i32) -> (i32, i32) {
    %c0_i32 = arith.constant 0 : i32
    %c0_i32_0 = arith.constant 0 : i32
    return %arg1, %c0_i32 : i32, i32
  }
  func.func @transform_2(%arg0: i32, %arg1: i32) -> (i32, i32) {
    %c0_i32 = arith.constant 0 : i32
    %c0_i32_0 = arith.constant 0 : i32
    %c0_i32_1 = arith.constant 0 : i32
    return %c0_i32, %c0_i32_0 : i32, i32
  }
  func.func @transform_3(%arg0: i32, %arg1: i32) -> (i32, i32) {
    %c0_i32 = arith.constant 0 : i32
    %c0_i32_0 = arith.constant 0 : i32
    %c0_i32_1 = arith.constant 0 : i32
    return %c0_i32, %c0_i32_0 : i32, i32
  }
  func.func @transform_4(%arg0: i32, %arg1: i32) -> (i32, i32) {
    %c0_i32 = arith.constant 0 : i32
    %c0_i32_0 = arith.constant 0 : i32
    %c0_i32_1 = arith.constant 0 : i32
    return %c0_i32, %c0_i32_0 : i32, i32
  }
  func.func @transform_5(%arg0: i32, %arg1: i32) -> (i32, i32) {
    %c0_i32 = arith.constant 0 : i32
    %c0_i32_0 = arith.constant 0 : i32
    return %arg0, %c0_i32 : i32, i32
  }
}

</mosaic_0001>

<llo_original>
// kernel: style_encoder_forward.3
$region0: #{style_encoder_forward.3}
  #allocation0 [shape = 'u32[]', space=smem, size = 0x4, offset = 0x4, fixed_abs, tag = 'smem constant byte address 0x4 - core index']
  #allocation1 [shape = 'u32[144,128]{1,0:T(1,128)}', space=vmem, size = 0x12000, scoped, tag = 'internal scratch']
  #allocation2 [shape = 'f32[256,128]{1,0:T(8,128)}', space=vmem, size = 0x20000, scoped, tag = 'scratch operand']
  %s0 = inlined_call_operand.vmem [shape: bf16[512,256], index: 0, kind: input, shape index: {}]
  %s1 = inlined_call_operand.vmem [shape: bf16[256,128], index: 1, kind: input, shape index: {}]
  %s2 = inlined_call_operand.vmem [shape: f32[1,128], index: 2, kind: input, shape index: {}]
  %s3 = inlined_call_operand.vmem [shape: bf16[512,128], index: 3, kind: output, shape index: {}]
  %s4 = sld [smem:[#allocation0]]
  $region53: #{style_encoder_forward.3} parent=0
    _
  %s6 = ssub.s32 1, %s4
  %s7 = scalar_select 0, %s6, %s4
  loop: start=0, step=1, limit=4
  $region2: #{style_encoder_forward.3} parent=0 // loop_pre_header
    _
  $region3: #{style_encoder_forward.3} parent=0 // loop_header
    %s9 = sphi 0, %s13
    %p10 = scmp.ge.s32.totalorder %s9, 4
    %s16 = sphi 0, %s28
    %s17 = sphi 0, %s24
    %s18 = sphi 0, %s16
    %s19 = sphi 0, %s17
    %s20 = sphi 0, %s18
    %s21 = sphi 0, %s19
    %s33 = sphi 0, %s35
    %s36 = sphi 0, %s33
    %s37 = sphi 0, %s36
    %s53 = sphi 0, %s37
    %s59 = sphi 0, %s61
    %s62 = sphi 0, %s59
    %s63 = sphi 0, %s62
    %s79 = sphi 0, %s63
    %s83 = sphi 0, %s83
    %s85 = sphi 0, %s83
    %s86 = sphi 0, %s85
    %s100 = sphi 0, %s86
    %s106 = sphi 0, %s108
    %s109 = sphi 0, %s106
    %s110 = sphi 0, %s109
    %s126 = sphi 0, %s110
  $region4: #{style_encoder_forward.3} parent=0 // loop_header_branch
    %12 = sbr.rel (%p10) target = $region8
  $region5: #{style_encoder_forward.3} parent=0 // loop_body
    %s14 = ssub.s32 %s9, 1
    %s15 = ssub.s32 %s9, 2
    %s22 = sadd.s32 1, %s17
    %p23 = scmp.ge.s32.totalorder %s22, 1
    %s24 = scalar_select %p23, 0, %s22
    %s25 = sadd.s32 1, %s16
    %s26 = scalar_select %p23, %s25, %s16
    %p27 = scmp.ge.s32.totalorder %s26, 2
    %s28 = scalar_select %p27, 0, %s26
    %s29 = ssub.s32 %s16, %s28
    %s30 = ssub.s32 %s17, %s24
    %s31 = sor.u32 %s29, %s30
    %p32 = scmp.eq.s32.totalorder %s31, 0
    %s34 = sadd.s32 %s33, 1
    %s35 = scalar_select %p32, %s33, %s34
    %p38 = pneg %p32
    %p39 = scmp.eq.s32.totalorder %s9, 1
    %p40 = por %p38, %p39
    %p41 = scmp.ne.s32.totalorder %s33, %s36
    %p42 = scmp.eq.s32.totalorder %s9, 0
    %p43 = por %p41, %p42
    %p44 = scmp.ne.s32.totalorder %s33, %s36
    %p45 = scmp.eq.s32.totalorder %s14, 1
    %p46 = por %p44, %p45
    %p47 = scmp.ne.s32.totalorder %s36, %s37
    %p48 = scmp.eq.s32.totalorder %s14, 0
    %p49 = por %p47, %p48
    %p50 = scmp.ne.s32.totalorder %s36, %s37
    %p51 = scmp.eq.s32.totalorder %s15, 1
    %p52 = por %p50, %p51
    %p54 = scmp.ne.s32.totalorder %s37, %s53
    %p55 = scmp.eq.s32.totalorder %s15, 0
    %p56 = por %p54, %p55
    %s57 = ssub.s32 %s17, %s24
    %p58 = scmp.eq.s32.totalorder %s57, 0
    %s60 = sadd.s32 %s59, 1
    %s61 = scalar_select %p58, %s59, %s60
    %p64 = pneg %p58
    %p65 = scmp.eq.s32.totalorder %s9, 1
    %p66 = por %p64, %p65
    %p67 = scmp.ne.s32.totalorder %s59, %s62
    %p68 = scmp.eq.s32.totalorder %s9, 0
    %p69 = por %p67, %p68
    %p70 = scmp.ne.s32.totalorder %s59, %s62
    %p71 = scmp.eq.s32.totalorder %s14, 1
    %p72 = por %p70, %p71
    %p73 = scmp.ne.s32.totalorder %s62, %s63
    %p74 = scmp.eq.s32.totalorder %s14, 0
    %p75 = por %p73, %p74
    %p76 = scmp.ne.s32.totalorder %s62, %s63
    %p77 = scmp.eq.s32.totalorder %s15, 1
    %p78 = por %p76, %p77
    %p80 = scmp.ne.s32.totalorder %s63, %s79
    %p81 = scmp.eq.s32.totalorder %s15, 0
    %p82 = por %p80, %p81
    %s84 = sadd.s32 %s83, 1
    %p87 = scmp.eq.s32.totalorder %s9, 1
    %p88 = scmp.ne.s32.totalorder %s83, %s85
    %p89 = scmp.eq.s32.totalorder %s9, 0
    %p90 = por %p88, %p89
    %p91 = scmp.ne.s32.totalorder %s83, %s85
    %p92 = scmp.eq.s32.totalorder %s14, 1
    %p93 = por %p91, %p92
    %p94 = scmp.ne.s32.totalorder %s85, %s86
    %p95 = scmp.eq.s32.totalorder %s14, 0
    %p96 = por %p94, %p95
    %p97 = scmp.ne.s32.totalorder %s85, %s86
    %p98 = scmp.eq.s32.totalorder %s15, 1
    %p99 = por %p97, %p98
    %p101 = scmp.ne.s32.totalorder %s86, %s100
    %p102 = scmp.eq.s32.totalorder %s15, 0
    %p103 = por %p101, %p102
    %s104 = ssub.s32 %s16, %s28
    %p105 = scmp.eq.s32.totalorder %s104, 0
    %s107 = sadd.s32 %s106, 1
    %s108 = scalar_select %p105, %s106, %s107
    %p111 = pneg %p105
    %p112 = scmp.eq.s32.totalorder %s9, 1
    %p113 = por %p111, %p112
    %p114 = scmp.ne.s32.totalorder %s106, %s109
    %p115 = scmp.eq.s32.totalorder %s9, 0
    %p116 = por %p114, %p115
    %p117 = scmp.ne.s32.totalorder %s106, %s109
    %p118 = scmp.eq.s32.totalorder %s14, 1
    %p119 = por %p117, %p118
    %p120 = scmp.ne.s32.totalorder %s109, %s110
    %p121 = scmp.eq.s32.totalorder %s14, 0
    %p122 = por %p120, %p121
    %p123 = scmp.ne.s32.totalorder %s109, %s110
    %p124 = scmp.eq.s32.totalorder %s15, 1
    %p125 = por %p123, %p124
    %p127 = scmp.ne.s32.totalorder %s110, %s126
    %p128 = scmp.eq.s32.totalorder %s15, 0
    %p129 = por %p127, %p128
    %p130 = scmp.le.s32.totalorder 1, %s9
    %p131 = scmp.lt.s32.totalorder %s9, 3
    %p132 = pnand %p130, %p131
    %p133 = pneg %p132
    // Predicated region
    $region9: #{style_encoder_forward.3} parent=5 // pred_check
      _
    $region10: #{style_encoder_forward.3} parent=5 // pred_check_branch
      %135 = sbr.rel (%p132) target = $region12
    $region11: #{style_encoder_forward.3} parent=5 // pred_region
      %s136 = ssub.s32 %s9, 1
      // Predicated region
      $region13: #{style_encoder_forward.3} parent=11 // pred_check
        %p137 = pneg %p75
      $region14: #{style_encoder_forward.3} parent=11 // pred_check_branch
        %139 = sbr.rel (%p137) target = $region16
      $region15: #{style_encoder_forward.3} parent=11 // pred_region
        %s140 = smul.u32 32, %s19
        %p141 = scmp.lt.s32.totalorder %s140, 31
        %s142 = scalar_select %p141, %s140, 31
        %s143 = smul.addr %s142, 4
        %s144 = scalar_lea.vmem %s1, %s143
        %s145 = smul.u32 32, %s19
      $region16: #{style_encoder_forward.3} parent=11 // pred_fallthru
        _
      // Predicated region
      $region17: #{style_encoder_forward.3} parent=11 // pred_check
        %p146 = pneg %p96
      $region18: #{style_encoder_forward.3} parent=11 // pred_check_branch
        %148 = sbr.rel (%p146) target = $region20
      $region19: #{style_encoder_forward.3} parent=11 // pred_region
        _
      $region20: #{style_encoder_forward.3} parent=11 // pred_fallthru
        _
    $region12: #{style_encoder_forward.3} parent=5 // pred_fallthru
      _
    %p149 = scmp.lt.s32.totalorder %s9, 2
    // Predicated region
    $region21: #{style_encoder_forward.3} parent=5 // pred_check
      %p150 = pneg %p149
    $region22: #{style_encoder_forward.3} parent=5 // pred_check_branch
      %152 = sbr.rel (%p150) target = $region24
    $region23: #{style_encoder_forward.3} parent=5 // pred_region
      // Predicated region
      $region25: #{style_encoder_forward.3} parent=23 // pred_check
        %p153 = pneg %p43
      $region26: #{style_encoder_forward.3} parent=23 // pred_check_branch
        %155 = sbr.rel (%p153) target = $region28
      $region27: #{style_encoder_forward.3} parent=23 // pred_region
        %s156 = smul.u32 32, %s16
        %s157 = smul.u32 2, %s17
        %p158 = scmp.lt.s32.totalorder %s156, 63
        %s159 = scalar_select %p158, %s156, 63
        %p160 = scmp.lt.s32.totalorder %s157, 1
        %s161 = scalar_select %p160, %s157, 1
        %s162 = smul.addr %s159, 2
        %s163 = sadd.s32 %s161, %s162
        %s164 = smul.addr %s163, 4
        %s165 = scalar_lea.vmem %s0, %s164
        %s166 = smul.u32 32, %s16
        %s167 = smul.u32 2, %s17
      $region28: #{style_encoder_forward.3} parent=23 // pred_fallthru
        _
    $region24: #{style_encoder_forward.3} parent=5 // pred_fallthru
      _
    %p168 = scmp.le.s32.totalorder 1, %s9
    %p169 = scmp.lt.s32.totalorder %s9, 3
    %p170 = pnand %p168, %p169
    %p171 = pneg %p170
    // Predicated region
    $region29: #{style_encoder_forward.3} parent=5 // pred_check
      _
    $region30: #{style_encoder_forward.3} parent=5 // pred_check_branch
      %173 = sbr.rel (%p170) target = $region32
    $region31: #{style_encoder_forward.3} parent=5 // pred_region
      %s174 = ssub.s32 %s9, 1
      %s175 = smul.u32 32, %s18
      %s176 = smul.u32 2, %s19
      %p177 = scmp.lt.s32.totalorder %s175, 63
      %s178 = scalar_select %p177, %s175, 63
      %p179 = scmp.lt.s32.totalorder %s176, 1
      %s180 = scalar_select %p179, %s176, 1
      %s181 = smul.addr %s178, 2
      %s182 = sadd.s32 %s180, %s181
      %s183 = smul.addr %s182, 4
      %s184 = scalar_lea.vmem %s0, %s183
      %p185 = pneg %p49
      %p186 = pneg %p46
      %s187 = smul.u32 32, %s19
      %p188 = scmp.lt.s32.totalorder %s187, 31
      %s189 = scalar_select %p188, %s187, 31
      %s190 = smul.addr %s189, 4
      %s191 = scalar_lea.vmem %s1, %s190
      %p192 = pneg %p75
      %p193 = pneg %p72
      %p194 = pneg %p96
      %p195 = pneg %p93
      %p196 = pneg %p122
      %p197 = pneg %p119
      %s198 = smul.u32 32, %s18
      %p199 = scmp.lt.s32.totalorder %s198, 63
      %s200 = scalar_select %p199, %s198, 63
      %s201 = smul.addr %s200, 4
      %s202 = scalar_lea.vmem %s3, %s201
      %s203 = smul.u32 32, %s18
      %s204 = smul.u32 2, %s19
      %p205 = scmp.lt.s32.totalorder %s203, 63
      %s206 = scalar_select %p205, %s203, 63
      %p207 = scmp.lt.s32.totalorder %s204, 1
      %s208 = scalar_select %p207, %s204, 1
      %s209 = smul.addr %s206, 2
      %s210 = sadd.s32 %s208, %s209
      %s211 = smul.addr %s210, 4
      %s212 = scalar_lea.vmem %s0, %s211
      %s213 = smul.u32 32, %s18
      %s214 = smul.u32 2, %s19
      %s215 = smul.u32 32, %s19
      %p216 = scmp.lt.s32.totalorder %s215, 31
      %s217 = scalar_select %p216, %s215, 31
      %s218 = smul.addr %s217, 4
      %s219 = scalar_lea.vmem %s1, %s218
      %s220 = smul.u32 32, %s19
      %s221 = smul.u32 32, %s18
      %p222 = scmp.lt.s32.totalorder %s221, 63
      %s223 = scalar_select %p222, %s221, 63
      %s224 = smul.addr %s223, 4
      %s225 = scalar_lea.vmem %s3, %s224
      %s226 = smul.u32 32, %s18
      %p228 = scmp.eq.s32.totalorder %s19, 0
      // Predicated region
      $region33: #{style_encoder_forward.3} parent=31 // pred_check
        %p229 = pneg %p228
      $region34: #{style_encoder_forward.3} parent=31 // pred_check_branch
        %231 = sbr.rel (%p229) target = $region36
      $region35: #{style_encoder_forward.3} parent=31 // pred_region
        %232 = vst [vmem:[#allocation2] sm:$0xff] 0.0
        %233 = vst [vmem:[#allocation2 + $0x8] sm:$0xff] 0.0
        %234 = vst [vmem:[#allocation2 + $0x10] sm:$0xff] 0.0
        %235 = vst [vmem:[#allocation2 + $0x18] sm:$0xff] 0.0
        %236 = vst [vmem:[#allocation2 + $0x20] sm:$0xff] 0.0
        %237 = vst [vmem:[#allocation2 + $0x28] sm:$0xff] 0.0
        %238 = vst [vmem:[#allocation2 + $0x30] sm:$0xff] 0.0
        %239 = vst [vmem:[#allocation2 + $0x38] sm:$0xff] 0.0
        %240 = vst [vmem:[#allocation2 + $0x40] sm:$0xff] 0.0
        %241 = vst [vmem:[#allocation2 + $0x48] sm:$0xff] 0.0
        %242 = vst [vmem:[#allocation2 + $0x50] sm:$0xff] 0.0
        %243 = vst [vmem:[#allocation2 + $0x58] sm:$0xff] 0.0
        %244 = vst [vmem:[#allocation2 + $0x60] sm:$0xff] 0.0
        %245 = vst [vmem:[#allocation2 + $0x68] sm:$0xff] 0.0
        %246 = vst [vmem:[#allocation2 + $0x70] sm:$0xff] 0.0
        %247 = vst [vmem:[#allocation2 + $0x78] sm:$0xff] 0.0
        %248 = vst [vmem:[#allocation2 + $0x80] sm:$0xff] 0.0
        %249 = vst [vmem:[#allocation2 + $0x88] sm:$0xff] 0.0
        %250 = vst [vmem:[#allocation2 + $0x90] sm:$0xff] 0.0
        %251 = vst [vmem:[#allocation2 + $0x98] sm:$0xff] 0.0
        %252 = vst [vmem:[#allocation2 + $0xa0] sm:$0xff] 0.0
        %253 = vst [vmem:[#allocation2 + $0xa8] sm:$0xff] 0.0
        %254 = vst [vmem:[#allocation2 + $0xb0] sm:$0xff] 0.0
        %255 = vst [vmem:[#allocation2 + $0xb8] sm:$0xff] 0.0
        %256 = vst [vmem:[#allocation2 + $0xc0] sm:$0xff] 0.0
        %257 = vst [vmem:[#allocation2 + $0xc8] sm:$0xff] 0.0
        %258 = vst [vmem:[#allocation2 + $0xd0] sm:$0xff] 0.0
        %259 = vst [vmem:[#allocation2 + $0xd8] sm:$0xff] 0.0
        %260 = vst [vmem:[#allocation2 + $0xe0] sm:$0xff] 0.0
        %261 = vst [vmem:[#allocation2 + $0xe8] sm:$0xff] 0.0
        %262 = vst [vmem:[#allocation2 + $0xf0] sm:$0xff] 0.0
        %263 = vst [vmem:[#allocation2 + $0xf8] sm:$0xff] 0.0
      $region36: #{style_encoder_forward.3} parent=31 // pred_fallthru
        _
      %v264 = vld [vmem:[#allocation2] sm:$0xff]
      %v265 = vld [vmem:[#allocation2 + $0x8] sm:$0xff]
      %v266 = vld [vmem:[#allocation2 + $0x10] sm:$0xff]
      %v267 = vld [vmem:[#allocation2 + $0x18] sm:$0xff]
      %v268 = vld [vmem:[#allocation2 + $0x20] sm:$0xff]
      %v269 = vld [vmem:[#allocation2 + $0x28] sm:$0xff]
      %v270 = vld [vmem:[#allocation2 + $0x30] sm:$0xff]
      %v271 = vld [vmem:[#allocation2 + $0x38] sm:$0xff]
      %v272 = vld [vmem:[#allocation2 + $0x40] sm:$0xff]
      %v273 = vld [vmem:[#allocation2 + $0x48] sm:$0xff]
      %v274 = vld [vmem:[#allocation2 + $0x50] sm:$0xff]
      %v275 = vld [vmem:[#allocation2 + $0x58] sm:$0xff]
      %v276 = vld [vmem:[#allocation2 + $0x60] sm:$0xff]
      %v277 = vld [vmem:[#allocation2 + $0x68] sm:$0xff]
      %v278 = vld [vmem:[#allocation2 + $0x70] sm:$0xff]
      %v279 = vld [vmem:[#allocation2 + $0x78] sm:$0xff]
      %v280 = vld [vmem:[#allocation2 + $0x80] sm:$0xff]
      %v281 = vld [vmem:[#allocation2 + $0x88] sm:$0xff]
      %v282 = vld [vmem:[#allocation2 + $0x90] sm:$0xff]
      %v283 = vld [vmem:[#allocation2 + $0x98] sm:$0xff]
      %v284 = vld [vmem:[#allocation2 + $0xa0] sm:$0xff]
      %v285 = vld [vmem:[#allocation2 + $0xa8] sm:$0xff]
      %v286 = vld [vmem:[#allocation2 + $0xb0] sm:$0xff]
      %v287 = vld [vmem:[#allocation2 + $0xb8] sm:$0xff]
      %v288 = vld [vmem:[#allocation2 + $0xc0] sm:$0xff]
      %v289 = vld [vmem:[#allocation2 + $0xc8] sm:$0xff]
      %v290 = vld [vmem:[#allocation2 + $0xd0] sm:$0xff]
      %v291 = vld [vmem:[#allocation2 + $0xd8] sm:$0xff]
      %v292 = vld [vmem:[#allocation2 + $0xe0] sm:$0xff]
      %v293 = vld [vmem:[#allocation2 + $0xe8] sm:$0xff]
      %v294 = vld [vmem:[#allocation2 + $0xf0] sm:$0xff]
      %v295 = vld [vmem:[#allocation2 + $0xf8] sm:$0xff]
      %v296 = vld [vmem:[%s212] sm:$0xff]
      %v297 = vld [vmem:[%s212 + $0x8] sm:$0xff]
      %v298 = vld [vmem:[%s212 + $0x10] sm:$0xff]
      %v299 = vld [vmem:[%s212 + $0x18] sm:$0xff]
      %v300 = vld [vmem:[%s212 + $0x20] sm:$0xff]
      %v301 = vld [vmem:[%s212 + $0x28] sm:$0xff]
      %v302 = vld [vmem:[%s212 + $0x30] sm:$0xff]
      %v303 = vld [vmem:[%s212 + $0x38] sm:$0xff]
      %v304 = vld [vmem:[%s212 + $0x40] sm:$0xff]
      %v305 = vld [vmem:[%s212 + $0x48] sm:$0xff]
      %v306 = vld [vmem:[%s212 + $0x50] sm:$0xff]
      %v307 = vld [vmem:[%s212 + $0x58] sm:$0xff]
      %v308 = vld [vmem:[%s212 + $0x60] sm:$0xff]
      %v309 = vld [vmem:[%s212 + $0x68] sm:$0xff]
      %v310 = vld [vmem:[%s212 + $0x70] sm:$0xff]
      %v311 = vld [vmem:[%s212 + $0x78] sm:$0xff]
      %v312 = vld [vmem:[%s212 + $0x80] sm:$0xff]
      %v313 = vld [vmem:[%s212 + $0x88] sm:$0xff]
      %v314 = vld [vmem:[%s212 + $0x90] sm:$0xff]
      %v315 = vld [vmem:[%s212 + $0x98] sm:$0xff]
      %v316 = vld [vmem:[%s212 + $0xa0] sm:$0xff]
      %v317 = vld [vmem:[%s212 + $0xa8] sm:$0xff]
      %v318 = vld [vmem:[%s212 + $0xb0] sm:$0xff]
      %v319 = vld [vmem:[%s212 + $0xb8] sm:$0xff]
      %v320 = vld [vmem:[%s212 + $0xc0] sm:$0xff]
      %v321 = vld [vmem:[%s212 + $0xc8] sm:$0xff]
      %v322 = vld [vmem:[%s212 + $0xd0] sm:$0xff]
      %v323 = vld [vmem:[%s212 + $0xd8] sm:$0xff]
      %v324 = vld [vmem:[%s212 + $0xe0] sm:$0xff]
      %v325 = vld [vmem:[%s212 + $0xe8] sm:$0xff]
      %v326 = vld [vmem:[%s212 + $0xf0] sm:$0xff]
      %v327 = vld [vmem:[%s212 + $0xf8] sm:$0xff]
      %v328 = vld [vmem:[%s219] sm:$0xf]
      %v329 = vld [vmem:[%s219 + $0x4] sm:$0xf]
      %v330 = vld [vmem:[%s219 + $0x8] sm:$0xf]
      %v331 = vld [vmem:[%s219 + $0xc] sm:$0xf]
      %v332 = vld [vmem:[%s219 + $0x10] sm:$0xf]
      %v333 = vld [vmem:[%s219 + $0x14] sm:$0xf]
      %v334 = vld [vmem:[%s219 + $0x18] sm:$0xf]
      %v335 = vld [vmem:[%s219 + $0x1c] sm:$0xf]
      %v336 = vld [vmem:[%s219 + $0x20] sm:$0xf]
      %v337 = vld [vmem:[%s219 + $0x24] sm:$0xf]
      %v338 = vld [vmem:[%s219 + $0x28] sm:$0xf]
      %v339 = vld [vmem:[%s219 + $0x2c] sm:$0xf]
      %v340 = vld [vmem:[%s219 + $0x30] sm:$0xf]
      %v341 = vld [vmem:[%s219 + $0x34] sm:$0xf]
      %v342 = vld [vmem:[%s219 + $0x38] sm:$0xf]
      %v343 = vld [vmem:[%s219 + $0x3c] sm:$0xf]
      %v344 = vld [vmem:[%s219 + $0x40] sm:$0xf]
      %v345 = vld [vmem:[%s219 + $0x44] sm:$0xf]
      %v346 = vld [vmem:[%s219 + $0x48] sm:$0xf]
      %v347 = vld [vmem:[%s219 + $0x4c] sm:$0xf]
      %v348 = vld [vmem:[%s219 + $0x50] sm:$0xf]
      %v349 = vld [vmem:[%s219 + $0x54] sm:$0xf]
      %v350 = vld [vmem:[%s219 + $0x58] sm:$0xf]
      %v351 = vld [vmem:[%s219 + $0x5c] sm:$0xf]
      %v352 = vld [vmem:[%s219 + $0x60] sm:$0xf]
      %v353 = vld [vmem:[%s219 + $0x64] sm:$0xf]
      %v354 = vld [vmem:[%s219 + $0x68] sm:$0xf]
      %v355 = vld [vmem:[%s219 + $0x6c] sm:$0xf]
      %v356 = vld [vmem:[%s219 + $0x70] sm:$0xf]
      %v357 = vld [vmem:[%s219 + $0x74] sm:$0xf]
      %v358 = vld [vmem:[%s219 + $0x78] sm:$0xf]
      %v359 = vld [vmem:[%s219 + $0x7c] sm:$0xf]
      %v392 = vunpack.c.l.b16 %v296
      %v393 = vunpack.c.h.b16 %v296
      %v394 = vunpack.c.l.b16 %v297
      %v395 = vunpack.c.h.b16 %v297
      %v396 = vunpack.c.l.b16 %v298
      %v397 = vunpack.c.h.b16 %v298
      %v398 = vunpack.c.l.b16 %v299
      %v399 = vunpack.c.h.b16 %v299
      %v400 = vunpack.c.l.b16 %v300
      %v401 = vunpack.c.h.b16 %v300
      %v402 = vunpack.c.l.b16 %v301
      %v403 = vunpack.c.h.b16 %v301
      %v404 = vunpack.c.l.b16 %v302
      %v405 = vunpack.c.h.b16 %v302
      %v406 = vunpack.c.l.b16 %v303
      %v407 = vunpack.c.h.b16 %v303
      %v408 = vunpack.c.l.b16 %v304
      %v409 = vunpack.c.h.b16 %v304
      %v410 = vunpack.c.l.b16 %v305
      %v411 = vunpack.c.h.b16 %v305
      %v412 = vunpack.c.l.b16 %v306
      %v413 = vunpack.c.h.b16 %v306
      %v414 = vunpack.c.l.b16 %v307
      %v415 = vunpack.c.h.b16 %v307
      %v416 = vunpack.c.l.b16 %v308
      %v417 = vunpack.c.h.b16 %v308
      %v418 = vunpack.c.l.b16 %v309
      %v419 = vunpack.c.h.b16 %v309
      %v420 = vunpack.c.l.b16 %v310
      %v421 = vunpack.c.h.b16 %v310
      %v422 = vunpack.c.l.b16 %v311
      %v423 = vunpack.c.h.b16 %v311
      %v424 = vunpack.c.l.b16 %v312
      %v425 = vunpack.c.h.b16 %v312
      %v426 = vunpack.c.l.b16 %v313
      %v427 = vunpack.c.h.b16 %v313
      %v428 = vunpack.c.l.b16 %v314
      %v429 = vunpack.c.h.b16 %v314
      %v430 = vunpack.c.l.b16 %v315
      %v431 = vunpack.c.h.b16 %v315
      %v432 = vunpack.c.l.b16 %v316
      %v433 = vunpack.c.h.b16 %v316
      %v434 = vunpack.c.l.b16 %v317
      %v435 = vunpack.c.h.b16 %v317
      %v436 = vunpack.c.l.b16 %v318
      %v437 = vunpack.c.h.b16 %v318
      %v438 = vunpack.c.l.b16 %v319
      %v439 = vunpack.c.h.b16 %v319
      %v440 = vunpack.c.l.b16 %v320
      %v441 = vunpack.c.h.b16 %v320
      %v442 = vunpack.c.l.b16 %v321
      %v443 = vunpack.c.h.b16 %v321
      %v444 = vunpack.c.l.b16 %v322
      %v445 = vunpack.c.h.b16 %v322
      %v446 = vunpack.c.l.b16 %v323
      %v447 = vunpack.c.h.b16 %v323
      %v448 = vunpack.c.l.b16 %v324
      %v449 = vunpack.c.h.b16 %v324
      %v450 = vunpack.c.l.b16 %v325
      %v451 = vunpack.c.h.b16 %v325
      %v452 = vunpack.c.l.b16 %v326
      %v453 = vunpack.c.h.b16 %v326
      %v454 = vunpack.c.l.b16 %v327
      %v455 = vunpack.c.h.b16 %v327
      %v456 = vpack.c.b16 %v394, %v392
      %v457 = vpack.c.b16 %v395, %v393
      %v458 = vpack.c.b16 %v398, %v396
      %v459 = vpack.c.b16 %v399, %v397
      %v460 = vpack.c.b16 %v402, %v400
      %v461 = vpack.c.b16 %v403, %v401
      %v462 = vpack.c.b16 %v406, %v404
      %v463 = vpack.c.b16 %v407, %v405
      %v464 = vpack.c.b16 %v410, %v408
      %v465 = vpack.c.b16 %v411, %v409
      %v466 = vpack.c.b16 %v414, %v412
      %v467 = vpack.c.b16 %v415, %v413
      %v468 = vpack.c.b16 %v418, %v416
      %v469 = vpack.c.b16 %v419, %v417
      %v470 = vpack.c.b16 %v422, %v420
      %v471 = vpack.c.b16 %v423, %v421
      %v472 = vpack.c.b16 %v426, %v424
      %v473 = vpack.c.b16 %v427, %v425
      %v474 = vpack.c.b16 %v430, %v428
      %v475 = vpack.c.b16 %v431, %v429
      %v476 = vpack.c.b16 %v434, %v432
      %v477 = vpack.c.b16 %v435, %v433
      %v478 = vpack.c.b16 %v438, %v436
      %v479 = vpack.c.b16 %v439, %v437
      %v480 = vpack.c.b16 %v442, %v440
      %v481 = vpack.c.b16 %v443, %v441
      %v482 = vpack.c.b16 %v446, %v444
      %v483 = vpack.c.b16 %v447, %v445
      %v484 = vpack.c.b16 %v450, %v448
      %v485 = vpack.c.b16 %v451, %v449
      %v486 = vpack.c.b16 %v454, %v452
      %v487 = vpack.c.b16 %v455, %v453
      %v552 = vunpack.c.l.b16 %v328
      %v553 = vunpack.c.l.b16 %v329
      %v554 = vunpack.c.l.b16 %v330
      %v555 = vunpack.c.l.b16 %v331
      %v556 = vunpack.c.l.b16 %v332
      %v557 = vunpack.c.l.b16 %v333
      %v558 = vunpack.c.l.b16 %v334
      %v559 = vunpack.c.l.b16 %v335
      %v560 = vunpack.c.l.b16 %v336
      %v561 = vunpack.c.l.b16 %v337
      %v562 = vunpack.c.l.b16 %v338
      %v563 = vunpack.c.l.b16 %v339
      %v564 = vunpack.c.l.b16 %v340
      %v565 = vunpack.c.l.b16 %v341
      %v566 = vunpack.c.l.b16 %v342
      %v567 = vunpack.c.l.b16 %v343
      %v568 = vunpack.c.l.b16 %v344
      %v569 = vunpack.c.l.b16 %v345
      %v570 = vunpack.c.l.b16 %v346
      %v571 = vunpack.c.l.b16 %v347
      %v572 = vunpack.c.l.b16 %v348
      %v573 = vunpack.c.l.b16 %v349
      %v574 = vunpack.c.l.b16 %v350
      %v575 = vunpack.c.l.b16 %v351
      %v576 = vunpack.c.l.b16 %v352
      %v577 = vunpack.c.l.b16 %v353
      %v578 = vunpack.c.l.b16 %v354
      %v579 = vunpack.c.l.b16 %v355
      %v580 = vunpack.c.l.b16 %v356
      %v581 = vunpack.c.l.b16 %v357
      %v582 = vunpack.c.l.b16 %v358
      %v583 = vunpack.c.l.b16 %v359
      %v584 = vpack.c.b16 %v553, %v552
      %v585 = vpack.c.b16 %v555, %v554
      %v586 = vpack.c.b16 %v557, %v556
      %v587 = vpack.c.b16 %v559, %v558
      %v588 = vpack.c.b16 %v561, %v560
      %v589 = vpack.c.b16 %v563, %v562
      %v590 = vpack.c.b16 %v565, %v564
      %v591 = vpack.c.b16 %v567, %v566
      %v592 = vpack.c.b16 %v569, %v568
      %v593 = vpack.c.b16 %v571, %v570
      %v594 = vpack.c.b16 %v573, %v572
      %v595 = vpack.c.b16 %v575, %v574
      %v596 = vpack.c.b16 %v577, %v576
      %v597 = vpack.c.b16 %v579, %v578
      %v598 = vpack.c.b16 %v581, %v580
      %v599 = vpack.c.b16 %v583, %v582
      %616 = vmatprep.subr.bf16.mxu0 0
      %617 = vmatpush1.bf16.msra.mxu0 %v584
      %618 = vmatprep.subr.bf16.mxu0 0
      %619 = vmatpush1.bf16.msra.mxu0 %v585
      %620 = vmatprep.subr.bf16.mxu0 0
      %621 = vmatpush1.bf16.msra.mxu0 %v586
      %622 = vmatprep.subr.bf16.mxu0 0
      %623 = vmatpush1.bf16.msra.mxu0 %v587
      %624 = vmatprep.subr.bf16.mxu0 0
      %625 = vmatpush1.bf16.msra.mxu0 %v588
      %626 = vmatprep.subr.bf16.mxu0 0
      %627 = vmatpush1.bf16.msra.mxu0 %v589
      %628 = vmatprep.subr.bf16.mxu0 0
      %629 = vmatpush1.bf16.msra.mxu0 %v590
      %630 = vmatprep.subr.bf16.mxu0 0
      %631 = vmatpush1.bf16.msra.mxu0 %v591
      %632 = vmatprep.subr.bf16.mxu0 0
      %633 = vmatpush1.bf16.msra.mxu0 %v592
      %634 = vmatprep.subr.bf16.mxu0 0
      %635 = vmatpush1.bf16.msra.mxu0 %v593
      %636 = vmatprep.subr.bf16.mxu0 0
      %637 = vmatpush1.bf16.msra.mxu0 %v594
      %638 = vmatprep.subr.bf16.mxu0 0
      %639 = vmatpush1.bf16.msra.mxu0 %v595
      %640 = vmatprep.subr.bf16.mxu0 0
      %641 = vmatpush1.bf16.msra.mxu0 %v596
      %642 = vmatprep.subr.bf16.mxu0 0
      %643 = vmatpush1.bf16.msra.mxu0 %v597
      %644 = vmatprep.subr.bf16.mxu0 0
      %645 = vmatpush1.bf16.msra.mxu0 %v598
      %646 = vmatprep.subr.bf16.mxu0 0
      %647 = vmatpush1.bf16.msra.mxu0 %v599
      %648 = vmatprep.mubr.bf16.mxu0 %v457
      %649 = vmatmul.mubr.bf16.gmra.mrb[0].mxu0 %v456
      %v650 = vpop.f32.mrb[0].mxu0
      %v651 = vadd.f32 0.0, %v650
      %v652 = vpop.f32.mrb[0].mxu0
      %v653 = vpop.f32.mrb[0].mxu0
      %v654 = vadd.f32 0.0, %v653
      %v655 = vpop.f32.mrb[0].mxu0
      %656 = vmatprep.mubr.bf16.mxu0 %v459
      %657 = vmatmul.mubr.bf16.gmra.mrb[0].mxu0 %v458
      %v658 = vpop.f32.mrb[0].mxu0
      %v659 = vadd.f32 0.0, %v658
      %v660 = vpop.f32.mrb[0].mxu0
      %v661 = vpop.f32.mrb[0].mxu0
      %v662 = vadd.f32 0.0, %v661
      %v663 = vpop.f32.mrb[0].mxu0
      %664 = vmatprep.mubr.bf16.mxu0 %v461
      %665 = vmatmul.mubr.bf16.gmra.mrb[0].mxu0 %v460
      %v666 = vpop.f32.mrb[0].mxu0
      %v667 = vadd.f32 0.0, %v666
      %v668 = vpop.f32.mrb[0].mxu0
      %v669 = vpop.f32.mrb[0].mxu0
      %v670 = vadd.f32 0.0, %v669
      %v671 = vpop.f32.mrb[0].mxu0
      %672 = vmatprep.mubr.bf16.mxu0 %v463
      %673 = vmatmul.mubr.bf16.gmra.mrb[0].mxu0 %v462
      %v674 = vpop.f32.mrb[0].mxu0
      %v675 = vadd.f32 0.0, %v674
      %v676 = vpop.f32.mrb[0].mxu0
      %v677 = vpop.f32.mrb[0].mxu0
      %v678 = vadd.f32 0.0, %v677
      %v679 = vpop.f32.mrb[0].mxu0
      %680 = vmatprep.mubr.bf16.mxu0 %v465
      %681 = vmatmul.mubr.bf16.gmra.mrb[0].mxu0 %v464
      %v682 = vpop.f32.mrb[0].mxu0
      %v683 = vadd.f32 0.0, %v682
      %v684 = vpop.f32.mrb[0].mxu0
      %v685 = vpop.f32.mrb[0].mxu0
      %v686 = vadd.f32 0.0, %v685
      %v687 = vpop.f32.mrb[0].mxu0
      %688 = vmatprep.mubr.bf16.mxu0 %v467
      %689 = vmatmul.mubr.bf16.gmra.mrb[0].mxu0 %v466
      %v690 = vpop.f32.mrb[0].mxu0
      %v691 = vadd.f32 0.0, %v690
      %v692 = vpop.f32.mrb[0].mxu0
      %v693 = vpop.f32.mrb[0].mxu0
      %v694 = vadd.f32 0.0, %v693
      %v695 = vpop.f32.mrb[0].mxu0
      %696 = vmatprep.mubr.bf16.mxu0 %v469
      %697 = vmatmul.mubr.bf16.gmra.mrb[0].mxu0 %v468
      %v698 = vpop.f32.mrb[0].mxu0
      %v699 = vadd.f32 0.0, %v698
      %v700 = vpop.f32.mrb[0].mxu0
      %v701 = vpop.f32.mrb[0].mxu0
      %v702 = vadd.f32 0.0, %v701
      %v703 = vpop.f32.mrb[0].mxu0
      %704 = vmatprep.mubr.bf16.mxu0 %v471
      %705 = vmatmul.mubr.bf16.gmra.mrb[0].mxu0 %v470
      %v706 = vpop.f32.mrb[0].mxu0
      %v707 = vadd.f32 0.0, %v706
      %v708 = vpop.f32.mrb[0].mxu0
      %v709 = vpop.f32.mrb[0].mxu0
      %v710 = vadd.f32 0.0, %v709
      %v711 = vpop.f32.mrb[0].mxu0
      %712 = vmatprep.mubr.bf16.mxu0 %v473
      %713 = vmatmul.mubr.bf16.gmra.mrb[0].mxu0 %v472
      %v714 = vpop.f32.mrb[0].mxu0
      %v715 = vadd.f32 0.0, %v714
      %v716 = vpop.f32.mrb[0].mxu0
      %v717 = vpop.f32.mrb[0].mxu0
      %v718 = vadd.f32 0.0, %v717
      %v719 = vpop.f32.mrb[0].mxu0
      %720 = vmatprep.mubr.bf16.mxu0 %v475
      %721 = vmatmul.mubr.bf16.gmra.mrb[0].mxu0 %v474
      %v722 = vpop.f32.mrb[0].mxu0
      %v723 = vadd.f32 0.0, %v722
      %v724 = vpop.f32.mrb[0].mxu0
      %v725 = vpop.f32.mrb[0].mxu0
      %v726 = vadd.f32 0.0, %v725
      %v727 = vpop.f32.mrb[0].mxu0
      %728 = vmatprep.mubr.bf16.mxu0 %v477
      %729 = vmatmul.mubr.bf16.gmra.mrb[0].mxu0 %v476
      %v730 = vpop.f32.mrb[0].mxu0
      %v731 = vadd.f32 0.0, %v730
      %v732 = vpop.f32.mrb[0].mxu0
      %v733 = vpop.f32.mrb[0].mxu0
      %v734 = vadd.f32 0.0, %v733
      %v735 = vpop.f32.mrb[0].mxu0
      %736 = vmatprep.mubr.bf16.mxu0 %v479
      %737 = vmatmul.mubr.bf16.gmra.mrb[0].mxu0 %v478
      %v738 = vpop.f32.mrb[0].mxu0
      %v739 = vadd.f32 0.0, %v738
      %v740 = vpop.f32.mrb[0].mxu0
      %v741 = vpop.f32.mrb[0].mxu0
      %v742 = vadd.f32 0.0, %v741
      %v743 = vpop.f32.mrb[0].mxu0
      %744 = vmatprep.mubr.bf16.mxu0 %v481
      %745 = vmatmul.mubr.bf16.gmra.mrb[0].mxu0 %v480
      %v746 = vpop.f32.mrb[0].mxu0
      %v747 = vadd.f32 0.0, %v746
      %v748 = vpop.f32.mrb[0].mxu0
      %v749 = vpop.f32.mrb[0].mxu0
      %v750 = vadd.f32 0.0, %v749
      %v751 = vpop.f32.mrb[0].mxu0
      %752 = vmatprep.mubr.bf16.mxu0 %v483
      %753 = vmatmul.mubr.bf16.gmra.mrb[0].mxu0 %v482
      %v754 = vpop.f32.mrb[0].mxu0
      %v755 = vadd.f32 0.0, %v754
      %v756 = vpop.f32.mrb[0].mxu0
      %v757 = vpop.f32.mrb[0].mxu0
      %v758 = vadd.f32 0.0, %v757
      %v759 = vpop.f32.mrb[0].mxu0
      %760 = vmatprep.mubr.bf16.mxu0 %v485
      %761 = vmatmul.mubr.bf16.gmra.mrb[0].mxu0 %v484
      %v762 = vpop.f32.mrb[0].mxu0
      %v763 = vadd.f32 0.0, %v762
      %v764 = vpop.f32.mrb[0].mxu0
      %v765 = vpop.f32.mrb[0].mxu0
      %v766 = vadd.f32 0.0, %v765
      %v767 = vpop.f32.mrb[0].mxu0
      %768 = vmatprep.mubr.bf16.mxu0 %v487
      %769 = vmatmul.mubr.bf16.gmra.mrb[0].mxu0 %v486
      %v770 = vpop.f32.mrb[0].mxu0
      %v771 = vadd.f32 0.0, %v770
      %v772 = vpop.f32.mrb[0].mxu0
      %v773 = vpop.f32.mrb[0].mxu0
      %v774 = vadd.f32 0.0, %v773
      %v775 = vpop.f32.mrb[0].mxu0
      %776 = vdwg.mxu0
      %v777 = vadd.f32 %v264, %v651
      %v778 = vadd.f32 %v265, %v654
      %v779 = vadd.f32 %v266, %v659
      %v780 = vadd.f32 %v267, %v662
      %v781 = vadd.f32 %v268, %v667
      %v782 = vadd.f32 %v269, %v670
      %v783 = vadd.f32 %v270, %v675
      %v784 = vadd.f32 %v271, %v678
      %v785 = vadd.f32 %v272, %v683
      %v786 = vadd.f32 %v273, %v686
      %v787 = vadd.f32 %v274, %v691
      %v788 = vadd.f32 %v275, %v694
      %v789 = vadd.f32 %v276, %v699
      %v790 = vadd.f32 %v277, %v702
      %v791 = vadd.f32 %v278, %v707
      %v792 = vadd.f32 %v279, %v710
      %v793 = vadd.f32 %v280, %v715
      %v794 = vadd.f32 %v281, %v718
      %v795 = vadd.f32 %v282, %v723
      %v796 = vadd.f32 %v283, %v726
      %v797 = vadd.f32 %v284, %v731
      %v798 = vadd.f32 %v285, %v734
      %v799 = vadd.f32 %v286, %v739
      %v800 = vadd.f32 %v287, %v742
      %v801 = vadd.f32 %v288, %v747
      %v802 = vadd.f32 %v289, %v750
      %v803 = vadd.f32 %v290, %v755
      %v804 = vadd.f32 %v291, %v758
      %v805 = vadd.f32 %v292, %v763
      %v806 = vadd.f32 %v293, %v766
      %v807 = vadd.f32 %v294, %v771
      %v808 = vadd.f32 %v295, %v774
      %809 = vst [vmem:[#allocation2] sm:$0xff] %v777
      %810 = vst [vmem:[#allocation2 + $0x8] sm:$0xff] %v778
      %811 = vst [vmem:[#allocation2 + $0x10] sm:$0xff] %v779
      %812 = vst [vmem:[#allocation2 + $0x18] sm:$0xff] %v780
      %813 = vst [vmem:[#allocation2 + $0x20] sm:$0xff] %v781
      %814 = vst [vmem:[#allocation2 + $0x28] sm:$0xff] %v782
      %815 = vst [vmem:[#allocation2 + $0x30] sm:$0xff] %v783
      %816 = vst [vmem:[#allocation2 + $0x38] sm:$0xff] %v784
      %817 = vst [vmem:[#allocation2 + $0x40] sm:$0xff] %v785
      %818 = vst [vmem:[#allocation2 + $0x48] sm:$0xff] %v786
      %819 = vst [vmem:[#allocation2 + $0x50] sm:$0xff] %v787
      %820 = vst [vmem:[#allocation2 + $0x58] sm:$0xff] %v788
      %821 = vst [vmem:[#allocation2 + $0x60] sm:$0xff] %v789
      %822 = vst [vmem:[#allocation2 + $0x68] sm:$0xff] %v790
      %823 = vst [vmem:[#allocation2 + $0x70] sm:$0xff] %v791
      %824 = vst [vmem:[#allocation2 + $0x78] sm:$0xff] %v792
      %825 = vst [vmem:[#allocation2 + $0x80] sm:$0xff] %v793
      %826 = vst [vmem:[#allocation2 + $0x88] sm:$0xff] %v794
      %827 = vst [vmem:[#allocation2 + $0x90] sm:$0xff] %v795
      %828 = vst [vmem:[#allocation2 + $0x98] sm:$0xff] %v796
      %829 = vst [vmem:[#allocation2 + $0xa0] sm:$0xff] %v797
      %830 = vst [vmem:[#allocation2 + $0xa8] sm:$0xff] %v798
      %831 = vst [vmem:[#allocation2 + $0xb0] sm:$0xff] %v799
      %832 = vst [vmem:[#allocation2 + $0xb8] sm:$0xff] %v800
      %833 = vst [vmem:[#allocation2 + $0xc0] sm:$0xff] %v801
      %834 = vst [vmem:[#allocation2 + $0xc8] sm:$0xff] %v802
      %835 = vst [vmem:[#allocation2 + $0xd0] sm:$0xff] %v803
      %836 = vst [vmem:[#allocation2 + $0xd8] sm:$0xff] %v804
      %837 = vst [vmem:[#allocation2 + $0xe0] sm:$0xff] %v805
      %838 = vst [vmem:[#allocation2 + $0xe8] sm:$0xff] %v806
      %839 = vst [vmem:[#allocation2 + $0xf0] sm:$0xff] %v807
      %840 = vst [vmem:[#allocation2 + $0xf8] sm:$0xff] %v808
      // Predicated region
      $region37: #{style_encoder_forward.3} parent=31 // pred_check
        %p841 = pneg %p228
      $region38: #{style_encoder_forward.3} parent=31 // pred_check_branch
        %843 = sbr.rel (%p841) target = $region40
      $region39: #{style_encoder_forward.3} parent=31 // pred_region
        %v844 = vld [vmem:[#allocation2] sm:$0xff]
        %v845 = vld [vmem:[#allocation2 + $0x8] sm:$0xff]
        %v846 = vld [vmem:[#allocation2 + $0x10] sm:$0xff]
        %v847 = vld [vmem:[#allocation2 + $0x18] sm:$0xff]
        %v848 = vld [vmem:[#allocation2 + $0x20] sm:$0xff]
        %v849 = vld [vmem:[#allocation2 + $0x28] sm:$0xff]
        %v850 = vld [vmem:[#allocation2 + $0x30] sm:$0xff]
        %v851 = vld [vmem:[#allocation2 + $0x38] sm:$0xff]
        %v852 = vld [vmem:[#allocation2 + $0x40] sm:$0xff]
        %v853 = vld [vmem:[#allocation2 + $0x48] sm:$0xff]
        %v854 = vld [vmem:[#allocation2 + $0x50] sm:$0xff]
        %v855 = vld [vmem:[#allocation2 + $0x58] sm:$0xff]
        %v856 = vld [vmem:[#allocation2 + $0x60] sm:$0xff]
        %v857 = vld [vmem:[#allocation2 + $0x68] sm:$0xff]
        %v858 = vld [vmem:[#allocation2 + $0x70] sm:$0xff]
        %v859 = vld [vmem:[#allocation2 + $0x78] sm:$0xff]
        %v860 = vld [vmem:[#allocation2 + $0x80] sm:$0xff]
        %v861 = vld [vmem:[#allocation2 + $0x88] sm:$0xff]
        %v862 = vld [vmem:[#allocation2 + $0x90] sm:$0xff]
        %v863 = vld [vmem:[#allocation2 + $0x98] sm:$0xff]
        %v864 = vld [vmem:[#allocation2 + $0xa0] sm:$0xff]
        %v865 = vld [vmem:[#allocation2 + $0xa8] sm:$0xff]
        %v866 = vld [vmem:[#allocation2 + $0xb0] sm:$0xff]
        %v867 = vld [vmem:[#allocation2 + $0xb8] sm:$0xff]
        %v868 = vld [vmem:[#allocation2 + $0xc0] sm:$0xff]
        %v869 = vld [vmem:[#allocation2 + $0xc8] sm:$0xff]
        %v870 = vld [vmem:[#allocation2 + $0xd0] sm:$0xff]
        %v871 = vld [vmem:[#allocation2 + $0xd8] sm:$0xff]
        %v872 = vld [vmem:[#allocation2 + $0xe0] sm:$0xff]
        %v873 = vld [vmem:[#allocation2 + $0xe8] sm:$0xff]
        %v874 = vld [vmem:[#allocation2 + $0xf0] sm:$0xff]
        %v875 = vld [vmem:[#allocation2 + $0xf8] sm:$0xff]
        %v876 = vld [vmem:[%s2] sm:$0x1]
        %v878 = vlaneseq
        %v879 = vshrl.u32 %v878, 7
        %v880 = vsub.s32 0, %v879
        %v881 = vrot.slane %v876, %v880
        %v883 = vadd.f32 %v844, %v881
        %v884 = vadd.f32 %v845, %v881
        %v885 = vadd.f32 %v846, %v881
        %v886 = vadd.f32 %v847, %v881
        %v887 = vadd.f32 %v848, %v881
        %v888 = vadd.f32 %v849, %v881
        %v889 = vadd.f32 %v850, %v881
        %v890 = vadd.f32 %v851, %v881
        %v891 = vadd.f32 %v852, %v881
        %v892 = vadd.f32 %v853, %v881
        %v893 = vadd.f32 %v854, %v881
        %v894 = vadd.f32 %v855, %v881
        %v895 = vadd.f32 %v856, %v881
        %v896 = vadd.f32 %v857, %v881
        %v897 = vadd.f32 %v858, %v881
        %v898 = vadd.f32 %v859, %v881
        %v899 = vadd.f32 %v860, %v881
        %v900 = vadd.f32 %v861, %v881
        %v901 = vadd.f32 %v862, %v881
        %v902 = vadd.f32 %v863, %v881
        %v903 = vadd.f32 %v864, %v881
        %v904 = vadd.f32 %v865, %v881
        %v905 = vadd.f32 %v866, %v881
        %v906 = vadd.f32 %v867, %v881
        %v907 = vadd.f32 %v868, %v881
        %v908 = vadd.f32 %v869, %v881
        %v909 = vadd.f32 %v870, %v881
        %v910 = vadd.f32 %v871, %v881
        %v911 = vadd.f32 %v872, %v881
        %v912 = vadd.f32 %v873, %v881
        %v913 = vadd.f32 %v874, %v881
        %v914 = vadd.f32 %v875, %v881
        %v915 = vmax.f32 %v883, 0.0
        %v916 = vmax.f32 %v884, 0.0
        %v917 = vmax.f32 %v885, 0.0
        %v918 = vmax.f32 %v886, 0.0
        %v919 = vmax.f32 %v887, 0.0
        %v920 = vmax.f32 %v888, 0.0
        %v921 = vmax.f32 %v889, 0.0
        %v922 = vmax.f32 %v890, 0.0
        %v923 = vmax.f32 %v891, 0.0
        %v924 = vmax.f32 %v892, 0.0
        %v925 = vmax.f32 %v893, 0.0
        %v926 = vmax.f32 %v894, 0.0
        %v927 = vmax.f32 %v895, 0.0
        %v928 = vmax.f32 %v896, 0.0
        %v929 = vmax.f32 %v897, 0.0
        %v930 = vmax.f32 %v898, 0.0
        %v931 = vmax.f32 %v899, 0.0
        %v932 = vmax.f32 %v900, 0.0
        %v933 = vmax.f32 %v901, 0.0
        %v934 = vmax.f32 %v902, 0.0
        %v935 = vmax.f32 %v903, 0.0
        %v936 = vmax.f32 %v904, 0.0
        %v937 = vmax.f32 %v905, 0.0
        %v938 = vmax.f32 %v906, 0.0
        %v939 = vmax.f32 %v907, 0.0
        %v940 = vmax.f32 %v908, 0.0
        %v941 = vmax.f32 %v909, 0.0
        %v942 = vmax.f32 %v910, 0.0
        %v943 = vmax.f32 %v911, 0.0
        %v944 = vmax.f32 %v912, 0.0
        %v945 = vmax.f32 %v913, 0.0
        %v946 = vmax.f32 %v914, 0.0
        %v947 = vpack.c.bf16 %v916, %v915
        %v948 = vpack.c.bf16 %v918, %v917
        %v949 = vpack.c.bf16 %v920, %v919
        %v950 = vpack.c.bf16 %v922, %v921
        %v951 = vpack.c.bf16 %v924, %v923
        %v952 = vpack.c.bf16 %v926, %v925
        %v953 = vpack.c.bf16 %v928, %v927
        %v954 = vpack.c.bf16 %v930, %v929
        %v955 = vpack.c.bf16 %v932, %v931
        %v956 = vpack.c.bf16 %v934, %v933
        %v957 = vpack.c.bf16 %v936, %v935
        %v958 = vpack.c.bf16 %v938, %v937
        %v959 = vpack.c.bf16 %v940, %v939
        %v960 = vpack.c.bf16 %v942, %v941
        %v961 = vpack.c.bf16 %v944, %v943
        %v962 = vpack.c.bf16 %v946, %v945
        %v979 = vunpack.c.l.b16 %v947
        %v980 = vunpack.c.h.b16 %v947
        %v981 = vunpack.c.l.b16 %v948
        %v982 = vunpack.c.h.b16 %v948
        %v983 = vunpack.c.l.b16 %v949
        %v984 = vunpack.c.h.b16 %v949
        %v985 = vunpack.c.l.b16 %v950
        %v986 = vunpack.c.h.b16 %v950
        %v987 = vunpack.c.l.b16 %v951
        %v988 = vunpack.c.h.b16 %v951
        %v989 = vunpack.c.l.b16 %v952
        %v990 = vunpack.c.h.b16 %v952
        %v991 = vunpack.c.l.b16 %v953
        %v992 = vunpack.c.h.b16 %v953
        %v993 = vunpack.c.l.b16 %v954
        %v994 = vunpack.c.h.b16 %v954
        %v995 = vunpack.c.l.b16 %v955
        %v996 = vunpack.c.h.b16 %v955
        %v997 = vunpack.c.l.b16 %v956
        %v998 = vunpack.c.h.b16 %v956
        %v999 = vunpack.c.l.b16 %v957
        %v1000 = vunpack.c.h.b16 %v957
        %v1001 = vunpack.c.l.b16 %v958
        %v1002 = vunpack.c.h.b16 %v958
        %v1003 = vunpack.c.l.b16 %v959
        %v1004 = vunpack.c.h.b16 %v959
        %v1005 = vunpack.c.l.b16 %v960
        %v1006 = vunpack.c.h.b16 %v960
        %v1007 = vunpack.c.l.b16 %v961
        %v1008 = vunpack.c.h.b16 %v961
        %v1009 = vunpack.c.l.b16 %v962
        %v1010 = vunpack.c.h.b16 %v962
        %v1011 = vpack.c.b16 %v979, %v979
        %v1012 = vpack.c.b16 %v980, %v980
        %v1013 = vpack.c.b16 %v981, %v981
        %v1014 = vpack.c.b16 %v982, %v982
        %v1015 = vpack.c.b16 %v983, %v983
        %v1016 = vpack.c.b16 %v984, %v984
        %v1017 = vpack.c.b16 %v985, %v985
        %v1018 = vpack.c.b16 %v986, %v986
        %v1019 = vpack.c.b16 %v987, %v987
        %v1020 = vpack.c.b16 %v988, %v988
        %v1021 = vpack.c.b16 %v989, %v989
        %v1022 = vpack.c.b16 %v990, %v990
        %v1023 = vpack.c.b16 %v991, %v991
        %v1024 = vpack.c.b16 %v992, %v992
        %v1025 = vpack.c.b16 %v993, %v993
        %v1026 = vpack.c.b16 %v994, %v994
        %v1027 = vpack.c.b16 %v995, %v995
        %v1028 = vpack.c.b16 %v996, %v996
        %v1029 = vpack.c.b16 %v997, %v997
        %v1030 = vpack.c.b16 %v998, %v998
        %v1031 = vpack.c.b16 %v999, %v999
        %v1032 = vpack.c.b16 %v1000, %v1000
        %v1033 = vpack.c.b16 %v1001, %v1001
        %v1034 = vpack.c.b16 %v1002, %v1002
        %v1035 = vpack.c.b16 %v1003, %v1003
        %v1036 = vpack.c.b16 %v1004, %v1004
        %v1037 = vpack.c.b16 %v1005, %v1005
        %v1038 = vpack.c.b16 %v1006, %v1006
        %v1039 = vpack.c.b16 %v1007, %v1007
        %v1040 = vpack.c.b16 %v1008, %v1008
        %v1041 = vpack.c.b16 %v1009, %v1009
        %v1042 = vpack.c.b16 %v1010, %v1010
        %1075 = vst [vmem:[%s225] sm:$0xf] %v1011
        %1076 = vst [vmem:[%s225 + $0x4] sm:$0xf] %v1012
        %1077 = vst [vmem:[%s225 + $0x8] sm:$0xf] %v1013
        %1078 = vst [vmem:[%s225 + $0xc] sm:$0xf] %v1014
        %1079 = vst [vmem:[%s225 + $0x10] sm:$0xf] %v1015
        %1080 = vst [vmem:[%s225 + $0x14] sm:$0xf] %v1016
        %1081 = vst [vmem:[%s225 + $0x18] sm:$0xf] %v1017
        %1082 = vst [vmem:[%s225 + $0x1c] sm:$0xf] %v1018
        %1083 = vst [vmem:[%s225 + $0x20] sm:$0xf] %v1019
        %1084 = vst [vmem:[%s225 + $0x24] sm:$0xf] %v1020
        %1085 = vst [vmem:[%s225 + $0x28] sm:$0xf] %v1021
        %1086 = vst [vmem:[%s225 + $0x2c] sm:$0xf] %v1022
        %1087 = vst [vmem:[%s225 + $0x30] sm:$0xf] %v1023
        %1088 = vst [vmem:[%s225 + $0x34] sm:$0xf] %v1024
        %1089 = vst [vmem:[%s225 + $0x38] sm:$0xf] %v1025
        %1090 = vst [vmem:[%s225 + $0x3c] sm:$0xf] %v1026
        %1091 = vst [vmem:[%s225 + $0x40] sm:$0xf] %v1027
        %1092 = vst [vmem:[%s225 + $0x44] sm:$0xf] %v1028
        %1093 = vst [vmem:[%s225 + $0x48] sm:$0xf] %v1029
        %1094 = vst [vmem:[%s225 + $0x4c] sm:$0xf] %v1030
        %1095 = vst [vmem:[%s225 + $0x50] sm:$0xf] %v1031
        %1096 = vst [vmem:[%s225 + $0x54] sm:$0xf] %v1032
        %1097 = vst [vmem:[%s225 + $0x58] sm:$0xf] %v1033
        %1098 = vst [vmem:[%s225 + $0x5c] sm:$0xf] %v1034
        %1099 = vst [vmem:[%s225 + $0x60] sm:$0xf] %v1035
        %1100 = vst [vmem:[%s225 + $0x64] sm:$0xf] %v1036
        %1101 = vst [vmem:[%s225 + $0x68] sm:$0xf] %v1037
        %1102 = vst [vmem:[%s225 + $0x6c] sm:$0xf] %v1038
        %1103 = vst [vmem:[%s225 + $0x70] sm:$0xf] %v1039
        %1104 = vst [vmem:[%s225 + $0x74] sm:$0xf] %v1040
        %1105 = vst [vmem:[%s225 + $0x78] sm:$0xf] %v1041
        %1106 = vst [vmem:[%s225 + $0x7c] sm:$0xf] %v1042
      $region40: #{style_encoder_forward.3} parent=31 // pred_fallthru
        _
      %s1107 = smul.u32 32, %s18
      %p1108 = scmp.lt.s32.totalorder %s1107, 63
      %s1109 = scalar_select %p1108, %s1107, 63
      %s1110 = smul.addr %s1109, 4
      %s1111 = scalar_lea.vmem %s3, %s1110
      // Predicated region
      $region41: #{style_encoder_forward.3} parent=31 // pred_check
        %p1112 = pneg %p119
      $region42: #{style_encoder_forward.3} parent=31 // pred_check_branch
        %1114 = sbr.rel (%p1112) target = $region44
      $region43: #{style_encoder_forward.3} parent=31 // pred_region
        %s1115 = smul.u32 32, %s18
      $region44: #{style_encoder_forward.3} parent=31 // pred_fallthru
        _
    $region32: #{style_encoder_forward.3} parent=5 // pred_fallthru
      _
    %p1116 = scmp.le.s32.totalorder 2, %s9
    // Predicated region
    $region45: #{style_encoder_forward.3} parent=5 // pred_check
      %p1117 = pneg %p1116
    $region46: #{style_encoder_forward.3} parent=5 // pred_check_branch
      %1119 = sbr.rel (%p1117) target = $region48
    $region47: #{style_encoder_forward.3} parent=5 // pred_region
      %s1120 = ssub.s32 %s9, 2
      // Predicated region
      $region49: #{style_encoder_forward.3} parent=47 // pred_check
        %p1121 = pneg %p125
      $region50: #{style_encoder_forward.3} parent=47 // pred_check_branch
        %1123 = sbr.rel (%p1121) target = $region52
      $region51: #{style_encoder_forward.3} parent=47 // pred_region
        %s1124 = smul.u32 32, %s20
        %p1125 = scmp.lt.s32.totalorder %s1124, 63
        %s1126 = scalar_select %p1125, %s1124, 63
        %s1127 = smul.addr %s1126, 4
        %s1128 = scalar_lea.vmem %s3, %s1127
      $region52: #{style_encoder_forward.3} parent=47 // pred_fallthru
        _
    $region48: #{style_encoder_forward.3} parent=5 // pred_fallthru
      _
  $region6: #{style_encoder_forward.3} parent=0 // loop_footer
    %s13 = sadd.s32 1, %s9
  $region7: #{style_encoder_forward.3} parent=0 // loop_footer_branch
    %8 = sbr.rel target = $region3
  $region8: #{style_encoder_forward.3} parent=0 // loop_exit
    _

// kernel: style_encoder_forward.4
$region0: #{style_encoder_forward.4}
  #allocation0 [shape = 'u32[]', space=smem, size = 0x4, offset = 0x4, fixed_abs, tag = 'smem constant byte address 0x4 - core index']
  #allocation1 [shape = 'u32[144,128]{1,0:T(1,128)}', space=vmem, size = 0x12000, scoped, tag = 'internal scratch']
  #allocation2 [shape = 'f32[128,128]{1,0:T(8,128)}', space=vmem, size = 0x10000, scoped, tag = 'scratch operand']
  %s0 = inlined_call_operand.vmem [shape: bf16[128,256], index: 0, kind: input, shape index: {}]
  %s1 = inlined_call_operand.vmem [shape: bf16[256,128], index: 1, kind: input, shape index: {}]
  %s2 = inlined_call_operand.vmem [shape: f32[1,128], index: 2, kind: input, shape index: {}]
  %s3 = inlined_call_operand.vmem [shape: bf16[128,128], index: 3, kind: output, shape index: {}]
  %s4 = sld [smem:[#allocation0]]
  $region30: #{style_encoder_forward.4} parent=0
    _
  %s6 = ssub.s32 1, %s4
  %s7 = scalar_select 0, %s6, %s4
  // Predicated region
  $region2: #{style_encoder_forward.4} parent=0 // pred_check
    _
  $region3: #{style_encoder_forward.4} parent=0 // pred_check_branch
    %9 = sbr.rel (0) target = $region5
  $region4: #{style_encoder_forward.4} parent=0 // pred_region
    _
  $region5: #{style_encoder_forward.4} parent=0 // pred_fallthru
    _
  // Predicated region
  $region6: #{style_encoder_forward.4} parent=0 // pred_check
    _
  $region7: #{style_encoder_forward.4} parent=0 // pred_check_branch
    %11 = sbr.rel (0) target = $region9
  $region8: #{style_encoder_forward.4} parent=0 // pred_region
    _
  $region9: #{style_encoder_forward.4} parent=0 // pred_fallthru
    _
  // Predicated region
  $region10: #{style_encoder_forward.4} parent=0 // pred_check
    _
  $region11: #{style_encoder_forward.4} parent=0 // pred_check_branch
    %13 = sbr.rel (0) target = $region13
  $region12: #{style_encoder_forward.4} parent=0 // pred_region
    _
  $region13: #{style_encoder_forward.4} parent=0 // pred_fallthru
    _
  %p15 = scmp.eq.s32.totalorder 0, 0
  // Predicated region
  $region14: #{style_encoder_forward.4} parent=0 // pred_check
    %p16 = pneg %p15
  $region15: #{style_encoder_forward.4} parent=0 // pred_check_branch
    %18 = sbr.rel (%p16) target = $region17
  $region16: #{style_encoder_forward.4} parent=0 // pred_region
    %19 = vst [vmem:[#allocation2] sm:$0xff] 0.0
    %20 = vst [vmem:[#allocation2 + $0x8] sm:$0xff] 0.0
    %21 = vst [vmem:[#allocation2 + $0x10] sm:$0xff] 0.0
    %22 = vst [vmem:[#allocation2 + $0x18] sm:$0xff] 0.0
    %23 = vst [vmem:[#allocation2 + $0x20] sm:$0xff] 0.0
    %24 = vst [vmem:[#allocation2 + $0x28] sm:$0xff] 0.0
    %25 = vst [vmem:[#allocation2 + $0x30] sm:$0xff] 0.0
    %26 = vst [vmem:[#allocation2 + $0x38] sm:$0xff] 0.0
    %27 = vst [vmem:[#allocation2 + $0x40] sm:$0xff] 0.0
    %28 = vst [vmem:[#allocation2 + $0x48] sm:$0xff] 0.0
    %29 = vst [vmem:[#allocation2 + $0x50] sm:$0xff] 0.0
    %30 = vst [vmem:[#allocation2 + $0x58] sm:$0xff] 0.0
    %31 = vst [vmem:[#allocation2 + $0x60] sm:$0xff] 0.0
    %32 = vst [vmem:[#allocation2 + $0x68] sm:$0xff] 0.0
    %33 = vst [vmem:[#allocation2 + $0x70] sm:$0xff] 0.0
    %34 = vst [vmem:[#allocation2 + $0x78] sm:$0xff] 0.0
  $region17: #{style_encoder_forward.4} parent=0 // pred_fallthru
    _
  %v35 = vld [vmem:[#allocation2] sm:$0xff]
  %v36 = vld [vmem:[#allocation2 + $0x8] sm:$0xff]
  %v37 = vld [vmem:[#allocation2 + $0x10] sm:$0xff]
  %v38 = vld [vmem:[#allocation2 + $0x18] sm:$0xff]
  %v39 = vld [vmem:[#allocation2 + $0x20] sm:$0xff]
  %v40 = vld [vmem:[#allocation2 + $0x28] sm:$0xff]
  %v41 = vld [vmem:[#allocation2 + $0x30] sm:$0xff]
  %v42 = vld [vmem:[#allocation2 + $0x38] sm:$0xff]
  %v43 = vld [vmem:[#allocation2 + $0x40] sm:$0xff]
  %v44 = vld [vmem:[#allocation2 + $0x48] sm:$0xff]
  %v45 = vld [vmem:[#allocation2 + $0x50] sm:$0xff]
  %v46 = vld [vmem:[#allocation2 + $0x58] sm:$0xff]
  %v47 = vld [vmem:[#allocation2 + $0x60] sm:$0xff]
  %v48 = vld [vmem:[#allocation2 + $0x68] sm:$0xff]
  %v49 = vld [vmem:[#allocation2 + $0x70] sm:$0xff]
  %v50 = vld [vmem:[#allocation2 + $0x78] sm:$0xff]
  %v51 = vld [vmem:[%s0] sm:$0xff]
  %v52 = vld [vmem:[%s0 + $0x8] sm:$0xff]
  %v53 = vld [vmem:[%s0 + $0x10] sm:$0xff]
  %v54 = vld [vmem:[%s0 + $0x18] sm:$0xff]
  %v55 = vld [vmem:[%s0 + $0x20] sm:$0xff]
  %v56 = vld [vmem:[%s0 + $0x28] sm:$0xff]
  %v57 = vld [vmem:[%s0 + $0x30] sm:$0xff]
  %v58 = vld [vmem:[%s0 + $0x38] sm:$0xff]
  %v59 = vld [vmem:[%s0 + $0x40] sm:$0xff]
  %v60 = vld [vmem:[%s0 + $0x48] sm:$0xff]
  %v61 = vld [vmem:[%s0 + $0x50] sm:$0xff]
  %v62 = vld [vmem:[%s0 + $0x58] sm:$0xff]
  %v63 = vld [vmem:[%s0 + $0x60] sm:$0xff]
  %v64 = vld [vmem:[%s0 + $0x68] sm:$0xff]
  %v65 = vld [vmem:[%s0 + $0x70] sm:$0xff]
  %v66 = vld [vmem:[%s0 + $0x78] sm:$0xff]
  %v67 = vld [vmem:[%s1] sm:$0xf]
  %v68 = vld [vmem:[%s1 + $0x4] sm:$0xf]
  %v69 = vld [vmem:[%s1 + $0x8] sm:$0xf]
  %v70 = vld [vmem:[%s1 + $0xc] sm:$0xf]
  %v71 = vld [vmem:[%s1 + $0x10] sm:$0xf]
  %v72 = vld [vmem:[%s1 + $0x14] sm:$0xf]
  %v73 = vld [vmem:[%s1 + $0x18] sm:$0xf]
  %v74 = vld [vmem:[%s1 + $0x1c] sm:$0xf]
  %v75 = vld [vmem:[%s1 + $0x20] sm:$0xf]
  %v76 = vld [vmem:[%s1 + $0x24] sm:$0xf]
  %v77 = vld [vmem:[%s1 + $0x28] sm:$0xf]
  %v78 = vld [vmem:[%s1 + $0x2c] sm:$0xf]
  %v79 = vld [vmem:[%s1 + $0x30] sm:$0xf]
  %v80 = vld [vmem:[%s1 + $0x34] sm:$0xf]
  %v81 = vld [vmem:[%s1 + $0x38] sm:$0xf]
  %v82 = vld [vmem:[%s1 + $0x3c] sm:$0xf]
  %v83 = vld [vmem:[%s1 + $0x40] sm:$0xf]
  %v84 = vld [vmem:[%s1 + $0x44] sm:$0xf]
  %v85 = vld [vmem:[%s1 + $0x48] sm:$0xf]
  %v86 = vld [vmem:[%s1 + $0x4c] sm:$0xf]
  %v87 = vld [vmem:[%s1 + $0x50] sm:$0xf]
  %v88 = vld [vmem:[%s1 + $0x54] sm:$0xf]
  %v89 = vld [vmem:[%s1 + $0x58] sm:$0xf]
  %v90 = vld [vmem:[%s1 + $0x5c] sm:$0xf]
  %v91 = vld [vmem:[%s1 + $0x60] sm:$0xf]
  %v92 = vld [vmem:[%s1 + $0x64] sm:$0xf]
  %v93 = vld [vmem:[%s1 + $0x68] sm:$0xf]
  %v94 = vld [vmem:[%s1 + $0x6c] sm:$0xf]
  %v95 = vld [vmem:[%s1 + $0x70] sm:$0xf]
  %v96 = vld [vmem:[%s1 + $0x74] sm:$0xf]
  %v97 = vld [vmem:[%s1 + $0x78] sm:$0xf]
  %v98 = vld [vmem:[%s1 + $0x7c] sm:$0xf]
  %v115 = vunpack.c.l.b16 %v51
  %v116 = vunpack.c.h.b16 %v51
  %v117 = vunpack.c.l.b16 %v52
  %v118 = vunpack.c.h.b16 %v52
  %v119 = vunpack.c.l.b16 %v53
  %v120 = vunpack.c.h.b16 %v53
  %v121 = vunpack.c.l.b16 %v54
  %v122 = vunpack.c.h.b16 %v54
  %v123 = vunpack.c.l.b16 %v55
  %v124 = vunpack.c.h.b16 %v55
  %v125 = vunpack.c.l.b16 %v56
  %v126 = vunpack.c.h.b16 %v56
  %v127 = vunpack.c.l.b16 %v57
  %v128 = vunpack.c.h.b16 %v57
  %v129 = vunpack.c.l.b16 %v58
  %v130 = vunpack.c.h.b16 %v58
  %v131 = vunpack.c.l.b16 %v59
  %v132 = vunpack.c.h.b16 %v59
  %v133 = vunpack.c.l.b16 %v60
  %v134 = vunpack.c.h.b16 %v60
  %v135 = vunpack.c.l.b16 %v61
  %v136 = vunpack.c.h.b16 %v61
  %v137 = vunpack.c.l.b16 %v62
  %v138 = vunpack.c.h.b16 %v62
  %v139 = vunpack.c.l.b16 %v63
  %v140 = vunpack.c.h.b16 %v63
  %v141 = vunpack.c.l.b16 %v64
  %v142 = vunpack.c.h.b16 %v64
  %v143 = vunpack.c.l.b16 %v65
  %v144 = vunpack.c.h.b16 %v65
  %v145 = vunpack.c.l.b16 %v66
  %v146 = vunpack.c.h.b16 %v66
  %v147 = vpack.c.b16 %v117, %v115
  %v148 = vpack.c.b16 %v118, %v116
  %v149 = vpack.c.b16 %v121, %v119
  %v150 = vpack.c.b16 %v122, %v120
  %v151 = vpack.c.b16 %v125, %v123
  %v152 = vpack.c.b16 %v126, %v124
  %v153 = vpack.c.b16 %v129, %v127
  %v154 = vpack.c.b16 %v130, %v128
  %v155 = vpack.c.b16 %v133, %v131
  %v156 = vpack.c.b16 %v134, %v132
  %v157 = vpack.c.b16 %v137, %v135
  %v158 = vpack.c.b16 %v138, %v136
  %v159 = vpack.c.b16 %v141, %v139
  %v160 = vpack.c.b16 %v142, %v140
  %v161 = vpack.c.b16 %v145, %v143
  %v162 = vpack.c.b16 %v146, %v144
  %v211 = vunpack.c.l.b16 %v67
  %v212 = vunpack.c.l.b16 %v68
  %v213 = vunpack.c.l.b16 %v69
  %v214 = vunpack.c.l.b16 %v70
  %v215 = vunpack.c.l.b16 %v71
  %v216 = vunpack.c.l.b16 %v72
  %v217 = vunpack.c.l.b16 %v73
  %v218 = vunpack.c.l.b16 %v74
  %v219 = vunpack.c.l.b16 %v75
  %v220 = vunpack.c.l.b16 %v76
  %v221 = vunpack.c.l.b16 %v77
  %v222 = vunpack.c.l.b16 %v78
  %v223 = vunpack.c.l.b16 %v79
  %v224 = vunpack.c.l.b16 %v80
  %v225 = vunpack.c.l.b16 %v81
  %v226 = vunpack.c.l.b16 %v82
  %v227 = vunpack.c.l.b16 %v83
  %v228 = vunpack.c.l.b16 %v84
  %v229 = vunpack.c.l.b16 %v85
  %v230 = vunpack.c.l.b16 %v86
  %v231 = vunpack.c.l.b16 %v87
  %v232 = vunpack.c.l.b16 %v88
  %v233 = vunpack.c.l.b16 %v89
  %v234 = vunpack.c.l.b16 %v90
  %v235 = vunpack.c.l.b16 %v91
  %v236 = vunpack.c.l.b16 %v92
  %v237 = vunpack.c.l.b16 %v93
  %v238 = vunpack.c.l.b16 %v94
  %v239 = vunpack.c.l.b16 %v95
  %v240 = vunpack.c.l.b16 %v96
  %v241 = vunpack.c.l.b16 %v97
  %v242 = vunpack.c.l.b16 %v98
  %v243 = vpack.c.b16 %v212, %v211
  %v244 = vpack.c.b16 %v214, %v213
  %v245 = vpack.c.b16 %v216, %v215
  %v246 = vpack.c.b16 %v218, %v217
  %v247 = vpack.c.b16 %v220, %v219
  %v248 = vpack.c.b16 %v222, %v221
  %v249 = vpack.c.b16 %v224, %v223
  %v250 = vpack.c.b16 %v226, %v225
  %v251 = vpack.c.b16 %v228, %v227
  %v252 = vpack.c.b16 %v230, %v229
  %v253 = vpack.c.b16 %v232, %v231
  %v254 = vpack.c.b16 %v234, %v233
  %v255 = vpack.c.b16 %v236, %v235
  %v256 = vpack.c.b16 %v238, %v237
  %v257 = vpack.c.b16 %v240, %v239
  %v258 = vpack.c.b16 %v242, %v241
  %275 = vmatprep.subr.bf16.mxu0 0
  %276 = vmatpush1.bf16.msra.mxu0 %v243
  %277 = vmatprep.subr.bf16.mxu0 0
  %278 = vmatpush1.bf16.msra.mxu0 %v244
  %279 = vmatprep.subr.bf16.mxu0 0
  %280 = vmatpush1.bf16.msra.mxu0 %v245
  %281 = vmatprep.subr.bf16.mxu0 0
  %282 = vmatpush1.bf16.msra.mxu0 %v246
  %283 = vmatprep.subr.bf16.mxu0 0
  %284 = vmatpush1.bf16.msra.mxu0 %v247
  %285 = vmatprep.subr.bf16.mxu0 0
  %286 = vmatpush1.bf16.msra.mxu0 %v248
  %287 = vmatprep.subr.bf16.mxu0 0
  %288 = vmatpush1.bf16.msra.mxu0 %v249
  %289 = vmatprep.subr.bf16.mxu0 0
  %290 = vmatpush1.bf16.msra.mxu0 %v250
  %291 = vmatprep.subr.bf16.mxu0 0
  %292 = vmatpush1.bf16.msra.mxu0 %v251
  %293 = vmatprep.subr.bf16.mxu0 0
  %294 = vmatpush1.bf16.msra.mxu0 %v252
  %295 = vmatprep.subr.bf16.mxu0 0
  %296 = vmatpush1.bf16.msra.mxu0 %v253
  %297 = vmatprep.subr.bf16.mxu0 0
  %298 = vmatpush1.bf16.msra.mxu0 %v254
  %299 = vmatprep.subr.bf16.mxu0 0
  %300 = vmatpush1.bf16.msra.mxu0 %v255
  %301 = vmatprep.subr.bf16.mxu0 0
  %302 = vmatpush1.bf16.msra.mxu0 %v256
  %303 = vmatprep.subr.bf16.mxu0 0
  %304 = vmatpush1.bf16.msra.mxu0 %v257
  %305 = vmatprep.subr.bf16.mxu0 0
  %306 = vmatpush1.bf16.msra.mxu0 %v258
  %307 = vmatprep.mubr.bf16.mxu0 %v148
  %308 = vmatmul.mubr.bf16.gmra.mrb[0].mxu0 %v147
  %v309 = vpop.f32.mrb[0].mxu0
  %v310 = vadd.f32 0.0, %v309
  %v311 = vpop.f32.mrb[0].mxu0
  %v312 = vpop.f32.mrb[0].mxu0
  %v313 = vadd.f32 0.0, %v312
  %v314 = vpop.f32.mrb[0].mxu0
  %315 = vmatprep.mubr.bf16.mxu0 %v150
  %316 = vmatmul.mubr.bf16.gmra.mrb[0].mxu0 %v149
  %v317 = vpop.f32.mrb[0].mxu0
  %v318 = vadd.f32 0.0, %v317
  %v319 = vpop.f32.mrb[0].mxu0
  %v320 = vpop.f32.mrb[0].mxu0
  %v321 = vadd.f32 0.0, %v320
  %v322 = vpop.f32.mrb[0].mxu0
  %323 = vmatprep.mubr.bf16.mxu0 %v152
  %324 = vmatmul.mubr.bf16.gmra.mrb[0].mxu0 %v151
  %v325 = vpop.f32.mrb[0].mxu0
  %v326 = vadd.f32 0.0, %v325
  %v327 = vpop.f32.mrb[0].mxu0
  %v328 = vpop.f32.mrb[0].mxu0
  %v329 = vadd.f32 0.0, %v328
  %v330 = vpop.f32.mrb[0].mxu0
  %331 = vmatprep.mubr.bf16.mxu0 %v154
  %332 = vmatmul.mubr.bf16.gmra.mrb[0].mxu0 %v153
  %v333 = vpop.f32.mrb[0].mxu0
  %v334 = vadd.f32 0.0, %v333
  %v335 = vpop.f32.mrb[0].mxu0
  %v336 = vpop.f32.mrb[0].mxu0
  %v337 = vadd.f32 0.0, %v336
  %v338 = vpop.f32.mrb[0].mxu0
  %339 = vmatprep.mubr.bf16.mxu0 %v156
  %340 = vmatmul.mubr.bf16.gmra.mrb[0].mxu0 %v155
  %v341 = vpop.f32.mrb[0].mxu0
  %v342 = vadd.f32 0.0, %v341
  %v343 = vpop.f32.mrb[0].mxu0
  %v344 = vpop.f32.mrb[0].mxu0
  %v345 = vadd.f32 0.0, %v344
  %v346 = vpop.f32.mrb[0].mxu0
  %347 = vmatprep.mubr.bf16.mxu0 %v158
  %348 = vmatmul.mubr.bf16.gmra.mrb[0].mxu0 %v157
  %v349 = vpop.f32.mrb[0].mxu0
  %v350 = vadd.f32 0.0, %v349
  %v351 = vpop.f32.mrb[0].mxu0
  %v352 = vpop.f32.mrb[0].mxu0
  %v353 = vadd.f32 0.0, %v352
  %v354 = vpop.f32.mrb[0].mxu0
  %355 = vmatprep.mubr.bf16.mxu0 %v160
  %356 = vmatmul.mubr.bf16.gmra.mrb[0].mxu0 %v159
  %v357 = vpop.f32.mrb[0].mxu0
  %v358 = vadd.f32 0.0, %v357
  %v359 = vpop.f32.mrb[0].mxu0
  %v360 = vpop.f32.mrb[0].mxu0
  %v361 = vadd.f32 0.0, %v360
  %v362 = vpop.f32.mrb[0].mxu0
  %363 = vmatprep.mubr.bf16.mxu0 %v162
  %364 = vmatmul.mubr.bf16.gmra.mrb[0].mxu0 %v161
  %v365 = vpop.f32.mrb[0].mxu0
  %v366 = vadd.f32 0.0, %v365
  %v367 = vpop.f32.mrb[0].mxu0
  %v368 = vpop.f32.mrb[0].mxu0
  %v369 = vadd.f32 0.0, %v368
  %v370 = vpop.f32.mrb[0].mxu0
  %371 = vdwg.mxu0
  %v372 = vadd.f32 %v35, %v310
  %v373 = vadd.f32 %v36, %v313
  %v374 = vadd.f32 %v37, %v318
  %v375 = vadd.f32 %v38, %v321
  %v376 = vadd.f32 %v39, %v326
  %v377 = vadd.f32 %v40, %v329
  %v378 = vadd.f32 %v41, %v334
  %v379 = vadd.f32 %v42, %v337
  %v380 = vadd.f32 %v43, %v342
  %v381 = vadd.f32 %v44, %v345
  %v382 = vadd.f32 %v45, %v350
  %v383 = vadd.f32 %v46, %v353
  %v384 = vadd.f32 %v47, %v358
  %v385 = vadd.f32 %v48, %v361
  %v386 = vadd.f32 %v49, %v366
  %v387 = vadd.f32 %v50, %v369
  %388 = vst [vmem:[#allocation2] sm:$0xff] %v372
  %389 = vst [vmem:[#allocation2 + $0x8] sm:$0xff] %v373
  %390 = vst [vmem:[#allocation2 + $0x10] sm:$0xff] %v374
  %391 = vst [vmem:[#allocation2 + $0x18] sm:$0xff] %v375
  %392 = vst [vmem:[#allocation2 + $0x20] sm:$0xff] %v376
  %393 = vst [vmem:[#allocation2 + $0x28] sm:$0xff] %v377
  %394 = vst [vmem:[#allocation2 + $0x30] sm:$0xff] %v378
  %395 = vst [vmem:[#allocation2 + $0x38] sm:$0xff] %v379
  %396 = vst [vmem:[#allocation2 + $0x40] sm:$0xff] %v380
  %397 = vst [vmem:[#allocation2 + $0x48] sm:$0xff] %v381
  %398 = vst [vmem:[#allocation2 + $0x50] sm:$0xff] %v382
  %399 = vst [vmem:[#allocation2 + $0x58] sm:$0xff] %v383
  %400 = vst [vmem:[#allocation2 + $0x60] sm:$0xff] %v384
  %401 = vst [vmem:[#allocation2 + $0x68] sm:$0xff] %v385
  %402 = vst [vmem:[#allocation2 + $0x70] sm:$0xff] %v386
  %403 = vst [vmem:[#allocation2 + $0x78] sm:$0xff] %v387
  // Predicated region
  $region18: #{style_encoder_forward.4} parent=0 // pred_check
    %p404 = pneg %p15
  $region19: #{style_encoder_forward.4} parent=0 // pred_check_branch
    %406 = sbr.rel (%p404) target = $region21
  $region20: #{style_encoder_forward.4} parent=0 // pred_region
    %v407 = vld [vmem:[#allocation2] sm:$0xff]
    %v408 = vld [vmem:[#allocation2 + $0x8] sm:$0xff]
    %v409 = vld [vmem:[#allocation2 + $0x10] sm:$0xff]
    %v410 = vld [vmem:[#allocation2 + $0x18] sm:$0xff]
    %v411 = vld [vmem:[#allocation2 + $0x20] sm:$0xff]
    %v412 = vld [vmem:[#allocation2 + $0x28] sm:$0xff]
    %v413 = vld [vmem:[#allocation2 + $0x30] sm:$0xff]
    %v414 = vld [vmem:[#allocation2 + $0x38] sm:$0xff]
    %v415 = vld [vmem:[#allocation2 + $0x40] sm:$0xff]
    %v416 = vld [vmem:[#allocation2 + $0x48] sm:$0xff]
    %v417 = vld [vmem:[#allocation2 + $0x50] sm:$0xff]
    %v418 = vld [vmem:[#allocation2 + $0x58] sm:$0xff]
    %v419 = vld [vmem:[#allocation2 + $0x60] sm:$0xff]
    %v420 = vld [vmem:[#allocation2 + $0x68] sm:$0xff]
    %v421 = vld [vmem:[#allocation2 + $0x70] sm:$0xff]
    %v422 = vld [vmem:[#allocation2 + $0x78] sm:$0xff]
    %v423 = vld [vmem:[%s2] sm:$0x1]
    %v425 = vlaneseq
    %v426 = vshrl.u32 %v425, 7
    %v427 = vsub.s32 0, %v426
    %v428 = vrot.slane %v423, %v427
    %v430 = vadd.f32 %v407, %v428
    %v431 = vadd.f32 %v408, %v428
    %v432 = vadd.f32 %v409, %v428
    %v433 = vadd.f32 %v410, %v428
    %v434 = vadd.f32 %v411, %v428
    %v435 = vadd.f32 %v412, %v428
    %v436 = vadd.f32 %v413, %v428
    %v437 = vadd.f32 %v414, %v428
    %v438 = vadd.f32 %v415, %v428
    %v439 = vadd.f32 %v416, %v428
    %v440 = vadd.f32 %v417, %v428
    %v441 = vadd.f32 %v418, %v428
    %v442 = vadd.f32 %v419, %v428
    %v443 = vadd.f32 %v420, %v428
    %v444 = vadd.f32 %v421, %v428
    %v445 = vadd.f32 %v422, %v428
    %v446 = vmax.f32 %v430, 0.0
    %v447 = vmax.f32 %v431, 0.0
    %v448 = vmax.f32 %v432, 0.0
    %v449 = vmax.f32 %v433, 0.0
    %v450 = vmax.f32 %v434, 0.0
    %v451 = vmax.f32 %v435, 0.0
    %v452 = vmax.f32 %v436, 0.0
    %v453 = vmax.f32 %v437, 0.0
    %v454 = vmax.f32 %v438, 0.0
    %v455 = vmax.f32 %v439, 0.0
    %v456 = vmax.f32 %v440, 0.0
    %v457 = vmax.f32 %v441, 0.0
    %v458 = vmax.f32 %v442, 0.0
    %v459 = vmax.f32 %v443, 0.0
    %v460 = vmax.f32 %v444, 0.0
    %v461 = vmax.f32 %v445, 0.0
    %v462 = vpack.c.bf16 %v447, %v446
    %v463 = vpack.c.bf16 %v449, %v448
    %v464 = vpack.c.bf16 %v451, %v450
    %v465 = vpack.c.bf16 %v453, %v452
    %v466 = vpack.c.bf16 %v455, %v454
    %v467 = vpack.c.bf16 %v457, %v456
    %v468 = vpack.c.bf16 %v459, %v458
    %v469 = vpack.c.bf16 %v461, %v460
    %v478 = vunpack.c.l.b16 %v462
    %v479 = vunpack.c.h.b16 %v462
    %v480 = vunpack.c.l.b16 %v463
    %v481 = vunpack.c.h.b16 %v463
    %v482 = vunpack.c.l.b16 %v464
    %v483 = vunpack.c.h.b16 %v464
    %v484 = vunpack.c.l.b16 %v465
    %v485 = vunpack.c.h.b16 %v465
    %v486 = vunpack.c.l.b16 %v466
    %v487 = vunpack.c.h.b16 %v466
    %v488 = vunpack.c.l.b16 %v467
    %v489 = vunpack.c.h.b16 %v467
    %v490 = vunpack.c.l.b16 %v468
    %v491 = vunpack.c.h.b16 %v468
    %v492 = vunpack.c.l.b16 %v469
    %v493 = vunpack.c.h.b16 %v469
    %v494 = vpack.c.b16 %v478, %v478
    %v495 = vpack.c.b16 %v479, %v479
    %v496 = vpack.c.b16 %v480, %v480
    %v497 = vpack.c.b16 %v481, %v481
    %v498 = vpack.c.b16 %v482, %v482
    %v499 = vpack.c.b16 %v483, %v483
    %v500 = vpack.c.b16 %v484, %v484
    %v501 = vpack.c.b16 %v485, %v485
    %v502 = vpack.c.b16 %v486, %v486
    %v503 = vpack.c.b16 %v487, %v487
    %v504 = vpack.c.b16 %v488, %v488
    %v505 = vpack.c.b16 %v489, %v489
    %v506 = vpack.c.b16 %v490, %v490
    %v507 = vpack.c.b16 %v491, %v491
    %v508 = vpack.c.b16 %v492, %v492
    %v509 = vpack.c.b16 %v493, %v493
    %526 = vst [vmem:[%s3] sm:$0xf] %v494
    %527 = vst [vmem:[%s3 + $0x4] sm:$0xf] %v495
    %528 = vst [vmem:[%s3 + $0x8] sm:$0xf] %v496
    %529 = vst [vmem:[%s3 + $0xc] sm:$0xf] %v497
    %530 = vst [vmem:[%s3 + $0x10] sm:$0xf] %v498
    %531 = vst [vmem:[%s3 + $0x14] sm:$0xf] %v499
    %532 = vst [vmem:[%s3 + $0x18] sm:$0xf] %v500
    %533 = vst [vmem:[%s3 + $0x1c] sm:$0xf] %v501
    %534 = vst [vmem:[%s3 + $0x20] sm:$0xf] %v502
    %535 = vst [vmem:[%s3 + $0x24] sm:$0xf] %v503
    %536 = vst [vmem:[%s3 + $0x28] sm:$0xf] %v504
    %537 = vst [vmem:[%s3 + $0x2c] sm:$0xf] %v505
    %538 = vst [vmem:[%s3 + $0x30] sm:$0xf] %v506
    %539 = vst [vmem:[%s3 + $0x34] sm:$0xf] %v507
    %540 = vst [vmem:[%s3 + $0x38] sm:$0xf] %v508
    %541 = vst [vmem:[%s3 + $0x3c] sm:$0xf] %v509
  $region21: #{style_encoder_forward.4} parent=0 // pred_fallthru
    _
  // Predicated region
  $region22: #{style_encoder_forward.4} parent=0 // pred_check
    _
  $region23: #{style_encoder_forward.4} parent=0 // pred_check_branch
    %543 = sbr.rel (0) target = $region25
  $region24: #{style_encoder_forward.4} parent=0 // pred_region
    _
  $region25: #{style_encoder_forward.4} parent=0 // pred_fallthru
    _
  // Predicated region
  $region26: #{style_encoder_forward.4} parent=0 // pred_check
    _
  $region27: #{style_encoder_forward.4} parent=0 // pred_check_branch
    %545 = sbr.rel (0) target = $region29
  $region28: #{style_encoder_forward.4} parent=0 // pred_region
    _
  $region29: #{style_encoder_forward.4} parent=0 // pred_fallthru
    _

// kernel: style_encoder_forward.5
$region0: #{style_encoder_forward.5}
  #allocation0 [shape = 'u32[]', space=smem, size = 0x4, offset = 0x4, fixed_abs, tag = 'smem constant byte address 0x4 - core index']
  #allocation1 [shape = 'u32[144,128]{1,0:T(1,128)}', space=vmem, size = 0x12000, scoped, tag = 'internal scratch']
  #allocation2 [shape = 'f32[32,128]{1,0:T(8,128)}', space=vmem, size = 0x4000, scoped, tag = 'scratch operand']
  %s0 = inlined_call_operand.vmem [shape: bf16[32,256], index: 0, kind: input, shape index: {}]
  %s1 = inlined_call_operand.vmem [shape: bf16[256,128], index: 1, kind: input, shape index: {}]
  %s2 = inlined_call_operand.vmem [shape: f32[1,128], index: 2, kind: input, shape index: {}]
  %s3 = inlined_call_operand.vmem [shape: bf16[128,128], index: 3, kind: input, shape index: {}]
  %s4 = inlined_call_operand.vmem [shape: f32[1,128], index: 4, kind: input, shape index: {}]
  %s5 = inlined_call_operand.hbm [shape: f32[32,128], index: 5, kind: output, shape index: {}]
  %s6 = sld [smem:[#allocation0]]
  $region38: #{style_encoder_forward.5} parent=0
    _
  %s8 = ssub.s32 1, %s6
  %s9 = scalar_select 0, %s8, %s6
  $region1: #{style_encoder_forward.5} parent=0
    #allocation3 [shape = 'u8[16384]{0}', space=vmem, size = 0x4000, scoped, tag = 'output window, operand 0, single buffered']
    #allocation4 [shape = 's32[1]{0}', space=sflag, size = 0x4, scoped, tag = 'scoped memory for style_encoder_forward.5']
    %10 = vsyncpa [#allocation4], 0
    // Predicated region
    $region2: #{style_encoder_forward.5} parent=1 // pred_check
      _
    $region3: #{style_encoder_forward.5} parent=1 // pred_check_branch
      %12 = sbr.rel (0) target = $region5
    $region4: #{style_encoder_forward.5} parent=1 // pred_region
      _
    $region5: #{style_encoder_forward.5} parent=1 // pred_fallthru
      _
    // Predicated region
    $region6: #{style_encoder_forward.5} parent=1 // pred_check
      _
    $region7: #{style_encoder_forward.5} parent=1 // pred_check_branch
      %14 = sbr.rel (0) target = $region9
    $region8: #{style_encoder_forward.5} parent=1 // pred_region
      _
    $region9: #{style_encoder_forward.5} parent=1 // pred_fallthru
      _
    // Predicated region
    $region10: #{style_encoder_forward.5} parent=1 // pred_check
      _
    $region11: #{style_encoder_forward.5} parent=1 // pred_check_branch
      %16 = sbr.rel (0) target = $region13
    $region12: #{style_encoder_forward.5} parent=1 // pred_region
      _
    $region13: #{style_encoder_forward.5} parent=1 // pred_fallthru
      _
    // Predicated region
    $region14: #{style_encoder_forward.5} parent=1 // pred_check
      _
    $region15: #{style_encoder_forward.5} parent=1 // pred_check_branch
      %18 = sbr.rel (0) target = $region17
    $region16: #{style_encoder_forward.5} parent=1 // pred_region
      _
    $region17: #{style_encoder_forward.5} parent=1 // pred_fallthru
      _
    // Predicated region
    $region18: #{style_encoder_forward.5} parent=1 // pred_check
      _
    $region19: #{style_encoder_forward.5} parent=1 // pred_check_branch
      %20 = sbr.rel (0) target = $region21
    $region20: #{style_encoder_forward.5} parent=1 // pred_region
      _
    $region21: #{style_encoder_forward.5} parent=1 // pred_fallthru
      _
    %p22 = scmp.eq.s32.totalorder 0, 0
    // Predicated region
    $region22: #{style_encoder_forward.5} parent=1 // pred_check
      %p23 = pneg %p22
    $region23: #{style_encoder_forward.5} parent=1 // pred_check_branch
      %25 = sbr.rel (%p23) target = $region25
    $region24: #{style_encoder_forward.5} parent=1 // pred_region
      %26 = vst [vmem:[#allocation2] sm:$0xff] 0.0
      %27 = vst [vmem:[#allocation2 + $0x8] sm:$0xff] 0.0
      %28 = vst [vmem:[#allocation2 + $0x10] sm:$0xff] 0.0
      %29 = vst [vmem:[#allocation2 + $0x18] sm:$0xff] 0.0
    $region25: #{style_encoder_forward.5} parent=1 // pred_fallthru
      _
    %v30 = vld [vmem:[#allocation2] sm:$0xff]
    %v31 = vld [vmem:[#allocation2 + $0x8] sm:$0xff]
    %v32 = vld [vmem:[#allocation2 + $0x10] sm:$0xff]
    %v33 = vld [vmem:[#allocation2 + $0x18] sm:$0xff]
    %v34 = vld [vmem:[%s0] sm:$0xff]
    %v35 = vld [vmem:[%s0 + $0x8] sm:$0xff]
    %v36 = vld [vmem:[%s0 + $0x10] sm:$0xff]
    %v37 = vld [vmem:[%s0 + $0x18] sm:$0xff]
    %v38 = vld [vmem:[%s1] sm:$0xf]
    %v39 = vld [vmem:[%s1 + $0x4] sm:$0xf]
    %v40 = vld [vmem:[%s1 + $0x8] sm:$0xf]
    %v41 = vld [vmem:[%s1 + $0xc] sm:$0xf]
    %v42 = vld [vmem:[%s1 + $0x10] sm:$0xf]
    %v43 = vld [vmem:[%s1 + $0x14] sm:$0xf]
    %v44 = vld [vmem:[%s1 + $0x18] sm:$0xf]
    %v45 = vld [vmem:[%s1 + $0x1c] sm:$0xf]
    %v46 = vld [vmem:[%s1 + $0x20] sm:$0xf]
    %v47 = vld [vmem:[%s1 + $0x24] sm:$0xf]
    %v48 = vld [vmem:[%s1 + $0x28] sm:$0xf]
    %v49 = vld [vmem:[%s1 + $0x2c] sm:$0xf]
    %v50 = vld [vmem:[%s1 + $0x30] sm:$0xf]
    %v51 = vld [vmem:[%s1 + $0x34] sm:$0xf]
    %v52 = vld [vmem:[%s1 + $0x38] sm:$0xf]
    %v53 = vld [vmem:[%s1 + $0x3c] sm:$0xf]
    %v54 = vld [vmem:[%s1 + $0x40] sm:$0xf]
    %v55 = vld [vmem:[%s1 + $0x44] sm:$0xf]
    %v56 = vld [vmem:[%s1 + $0x48] sm:$0xf]
    %v57 = vld [vmem:[%s1 + $0x4c] sm:$0xf]
    %v58 = vld [vmem:[%s1 + $0x50] sm:$0xf]
    %v59 = vld [vmem:[%s1 + $0x54] sm:$0xf]
    %v60 = vld [vmem:[%s1 + $0x58] sm:$0xf]
    %v61 = vld [vmem:[%s1 + $0x5c] sm:$0xf]
    %v62 = vld [vmem:[%s1 + $0x60] sm:$0xf]
    %v63 = vld [vmem:[%s1 + $0x64] sm:$0xf]
    %v64 = vld [vmem:[%s1 + $0x68] sm:$0xf]
    %v65 = vld [vmem:[%s1 + $0x6c] sm:$0xf]
    %v66 = vld [vmem:[%s1 + $0x70] sm:$0xf]
    %v67 = vld [vmem:[%s1 + $0x74] sm:$0xf]
    %v68 = vld [vmem:[%s1 + $0x78] sm:$0xf]
    %v69 = vld [vmem:[%s1 + $0x7c] sm:$0xf]
    %v74 = vunpack.c.l.b16 %v34
    %v75 = vunpack.c.h.b16 %v34
    %v76 = vunpack.c.l.b16 %v35
    %v77 = vunpack.c.h.b16 %v35
    %v78 = vunpack.c.l.b16 %v36
    %v79 = vunpack.c.h.b16 %v36
    %v80 = vunpack.c.l.b16 %v37
    %v81 = vunpack.c.h.b16 %v37
    %v82 = vpack.c.b16 %v76, %v74
    %v83 = vpack.c.b16 %v77, %v75
    %v84 = vpack.c.b16 %v80, %v78
    %v85 = vpack.c.b16 %v81, %v79
    %v122 = vunpack.c.l.b16 %v38
    %v123 = vunpack.c.l.b16 %v39
    %v124 = vunpack.c.l.b16 %v40
    %v125 = vunpack.c.l.b16 %v41
    %v126 = vunpack.c.l.b16 %v42
    %v127 = vunpack.c.l.b16 %v43
    %v128 = vunpack.c.l.b16 %v44
    %v129 = vunpack.c.l.b16 %v45
    %v130 = vunpack.c.l.b16 %v46
    %v131 = vunpack.c.l.b16 %v47
    %v132 = vunpack.c.l.b16 %v48
    %v133 = vunpack.c.l.b16 %v49
    %v134 = vunpack.c.l.b16 %v50
    %v135 = vunpack.c.l.b16 %v51
    %v136 = vunpack.c.l.b16 %v52
    %v137 = vunpack.c.l.b16 %v53
    %v138 = vunpack.c.l.b16 %v54
    %v139 = vunpack.c.l.b16 %v55
    %v140 = vunpack.c.l.b16 %v56
    %v141 = vunpack.c.l.b16 %v57
    %v142 = vunpack.c.l.b16 %v58
    %v143 = vunpack.c.l.b16 %v59
    %v144 = vunpack.c.l.b16 %v60
    %v145 = vunpack.c.l.b16 %v61
    %v146 = vunpack.c.l.b16 %v62
    %v147 = vunpack.c.l.b16 %v63
    %v148 = vunpack.c.l.b16 %v64
    %v149 = vunpack.c.l.b16 %v65
    %v150 = vunpack.c.l.b16 %v66
    %v151 = vunpack.c.l.b16 %v67
    %v152 = vunpack.c.l.b16 %v68
    %v153 = vunpack.c.l.b16 %v69
    %v154 = vpack.c.b16 %v123, %v122
    %v155 = vpack.c.b16 %v125, %v124
    %v156 = vpack.c.b16 %v127, %v126
    %v157 = vpack.c.b16 %v129, %v128
    %v158 = vpack.c.b16 %v131, %v130
    %v159 = vpack.c.b16 %v133, %v132
    %v160 = vpack.c.b16 %v135, %v134
    %v161 = vpack.c.b16 %v137, %v136
    %v162 = vpack.c.b16 %v139, %v138
    %v163 = vpack.c.b16 %v141, %v140
    %v164 = vpack.c.b16 %v143, %v142
    %v165 = vpack.c.b16 %v145, %v144
    %v166 = vpack.c.b16 %v147, %v146
    %v167 = vpack.c.b16 %v149, %v148
    %v168 = vpack.c.b16 %v151, %v150
    %v169 = vpack.c.b16 %v153, %v152
    %186 = vmatprep.subr.bf16.mxu0 0
    %187 = vmatpush1.bf16.msra.mxu0 %v154
    %188 = vmatprep.subr.bf16.mxu0 0
    %189 = vmatpush1.bf16.msra.mxu0 %v155
    %190 = vmatprep.subr.bf16.mxu0 0
    %191 = vmatpush1.bf16.msra.mxu0 %v156
    %192 = vmatprep.subr.bf16.mxu0 0
    %193 = vmatpush1.bf16.msra.mxu0 %v157
    %194 = vmatprep.subr.bf16.mxu0 0
    %195 = vmatpush1.bf16.msra.mxu0 %v158
    %196 = vmatprep.subr.bf16.mxu0 0
    %197 = vmatpush1.bf16.msra.mxu0 %v159
    %198 = vmatprep.subr.bf16.mxu0 0
    %199 = vmatpush1.bf16.msra.mxu0 %v160
    %200 = vmatprep.subr.bf16.mxu0 0
    %201 = vmatpush1.bf16.msra.mxu0 %v161
    %202 = vmatprep.subr.bf16.mxu0 0
    %203 = vmatpush1.bf16.msra.mxu0 %v162
    %204 = vmatprep.subr.bf16.mxu0 0
    %205 = vmatpush1.bf16.msra.mxu0 %v163
    %206 = vmatprep.subr.bf16.mxu0 0
    %207 = vmatpush1.bf16.msra.mxu0 %v164
    %208 = vmatprep.subr.bf16.mxu0 0
    %209 = vmatpush1.bf16.msra.mxu0 %v165
    %210 = vmatprep.subr.bf16.mxu0 0
    %211 = vmatpush1.bf16.msra.mxu0 %v166
    %212 = vmatprep.subr.bf16.mxu0 0
    %213 = vmatpush1.bf16.msra.mxu0 %v167
    %214 = vmatprep.subr.bf16.mxu0 0
    %215 = vmatpush1.bf16.msra.mxu0 %v168
    %216 = vmatprep.subr.bf16.mxu0 0
    %217 = vmatpush1.bf16.msra.mxu0 %v169
    %218 = vmatprep.mubr.bf16.mxu0 %v83
    %219 = vmatmul.mubr.bf16.gmra.mrb[0].mxu0 %v82
    %v220 = vpop.f32.mrb[0].mxu0
    %v221 = vadd.f32 0.0, %v220
    %v222 = vpop.f32.mrb[0].mxu0
    %v223 = vpop.f32.mrb[0].mxu0
    %v224 = vadd.f32 0.0, %v223
    %v225 = vpop.f32.mrb[0].mxu0
    %226 = vmatprep.mubr.bf16.mxu0 %v85
    %227 = vmatmul.mubr.bf16.gmra.mrb[0].mxu0 %v84
    %v228 = vpop.f32.mrb[0].mxu0
    %v229 = vadd.f32 0.0, %v228
    %v230 = vpop.f32.mrb[0].mxu0
    %v231 = vpop.f32.mrb[0].mxu0
    %v232 = vadd.f32 0.0, %v231
    %v233 = vpop.f32.mrb[0].mxu0
    %234 = vdwg.mxu0
    %v235 = vadd.f32 %v30, %v221
    %v236 = vadd.f32 %v31, %v224
    %v237 = vadd.f32 %v32, %v229
    %v238 = vadd.f32 %v33, %v232
    %239 = vst [vmem:[#allocation2] sm:$0xff] %v235
    %240 = vst [vmem:[#allocation2 + $0x8] sm:$0xff] %v236
    %241 = vst [vmem:[#allocation2 + $0x10] sm:$0xff] %v237
    %242 = vst [vmem:[#allocation2 + $0x18] sm:$0xff] %v238
    // Predicated region
    $region26: #{style_encoder_forward.5} parent=1 // pred_check
      %p243 = pneg %p22
    $region27: #{style_encoder_forward.5} parent=1 // pred_check_branch
      %245 = sbr.rel (%p243) target = $region29
    $region28: #{style_encoder_forward.5} parent=1 // pred_region
      %v246 = vld [vmem:[#allocation2] sm:$0xff]
      %v247 = vld [vmem:[#allocation2 + $0x8] sm:$0xff]
      %v248 = vld [vmem:[#allocation2 + $0x10] sm:$0xff]
      %v249 = vld [vmem:[#allocation2 + $0x18] sm:$0xff]
      %v250 = vld [vmem:[%s2] sm:$0x1]
      %v252 = vlaneseq
      %v253 = vshrl.u32 %v252, 7
      %v254 = vsub.s32 0, %v253
      %v255 = vrot.slane %v250, %v254
      %v257 = vadd.f32 %v246, %v255
      %v258 = vadd.f32 %v247, %v255
      %v259 = vadd.f32 %v248, %v255
      %v260 = vadd.f32 %v249, %v255
      %v261 = vmax.f32 %v257, 0.0
      %v262 = vmax.f32 %v258, 0.0
      %v263 = vmax.f32 %v259, 0.0
      %v264 = vmax.f32 %v260, 0.0
      %v265 = vpack.c.bf16 %v262, %v261
      %v266 = vpack.c.bf16 %v264, %v263
      %v267 = vld [vmem:[%s3] sm:$0xf]
      %v268 = vld [vmem:[%s3 + $0x4] sm:$0xf]
      %v269 = vld [vmem:[%s3 + $0x8] sm:$0xf]
      %v270 = vld [vmem:[%s3 + $0xc] sm:$0xf]
      %v271 = vld [vmem:[%s3 + $0x10] sm:$0xf]
      %v272 = vld [vmem:[%s3 + $0x14] sm:$0xf]
      %v273 = vld [vmem:[%s3 + $0x18] sm:$0xf]
      %v274 = vld [vmem:[%s3 + $0x1c] sm:$0xf]
      %v275 = vld [vmem:[%s3 + $0x20] sm:$0xf]
      %v276 = vld [vmem:[%s3 + $0x24] sm:$0xf]
      %v277 = vld [vmem:[%s3 + $0x28] sm:$0xf]
      %v278 = vld [vmem:[%s3 + $0x2c] sm:$0xf]
      %v279 = vld [vmem:[%s3 + $0x30] sm:$0xf]
      %v280 = vld [vmem:[%s3 + $0x34] sm:$0xf]
      %v281 = vld [vmem:[%s3 + $0x38] sm:$0xf]
      %v282 = vld [vmem:[%s3 + $0x3c] sm:$0xf]
      %v283 = vld [vmem:[%s4] sm:$0x1]
      %v285 = vlaneseq
      %v286 = vshrl.u32 %v285, 7
      %v287 = vsub.s32 0, %v286
      %v288 = vrot.slane %v283, %v287
      %v306 = vunpack.c.l.b16 %v267
      %v307 = vunpack.c.l.b16 %v268
      %v308 = vunpack.c.l.b16 %v269
      %v309 = vunpack.c.l.b16 %v270
      %v310 = vunpack.c.l.b16 %v271
      %v311 = vunpack.c.l.b16 %v272
      %v312 = vunpack.c.l.b16 %v273
      %v313 = vunpack.c.l.b16 %v274
      %v314 = vunpack.c.l.b16 %v275
      %v315 = vunpack.c.l.b16 %v276
      %v316 = vunpack.c.l.b16 %v277
      %v317 = vunpack.c.l.b16 %v278
      %v318 = vunpack.c.l.b16 %v279
      %v319 = vunpack.c.l.b16 %v280
      %v320 = vunpack.c.l.b16 %v281
      %v321 = vunpack.c.l.b16 %v282
      %v322 = vpack.c.b16 %v307, %v306
      %v323 = vpack.c.b16 %v309, %v308
      %v324 = vpack.c.b16 %v311, %v310
      %v325 = vpack.c.b16 %v313, %v312
      %v326 = vpack.c.b16 %v315, %v314
      %v327 = vpack.c.b16 %v317, %v316
      %v328 = vpack.c.b16 %v319, %v318
      %v329 = vpack.c.b16 %v321, %v320
      %338 = vmatprep.subr.bf16.mxu0 0
      %339 = vmatpush1.bf16.msra.mxu0 %v322
      %340 = vmatprep.subr.bf16.mxu0 0
      %341 = vmatpush1.bf16.msra.mxu0 %v323
      %342 = vmatprep.subr.bf16.mxu0 0
      %343 = vmatpush1.bf16.msra.mxu0 %v324
      %344 = vmatprep.subr.bf16.mxu0 0
      %345 = vmatpush1.bf16.msra.mxu0 %v325
      %346 = vmatprep.subr.bf16.mxu0 0
      %347 = vmatpush1.bf16.msra.mxu0 %v326
      %348 = vmatprep.subr.bf16.mxu0 0
      %349 = vmatpush1.bf16.msra.mxu0 %v327
      %350 = vmatprep.subr.bf16.mxu0 0
      %351 = vmatpush1.bf16.msra.mxu0 %v328
      %352 = vmatprep.subr.bf16.mxu0 0
      %353 = vmatpush1.bf16.msra.mxu0 %v329
      %354 = vmatprep.subr.bf16.mxu0 0
      %355 = vmatpush1.bf16.msra.mxu0 0
      %356 = vmatprep.subr.bf16.mxu0 0
      %357 = vmatpush1.bf16.msra.mxu0 0
      %358 = vmatprep.subr.bf16.mxu0 0
      %359 = vmatpush1.bf16.msra.mxu0 0
      %360 = vmatprep.subr.bf16.mxu0 0
      %361 = vmatpush1.bf16.msra.mxu0 0
      %362 = vmatprep.subr.bf16.mxu0 0
      %363 = vmatpush1.bf16.msra.mxu0 0
      %364 = vmatprep.subr.bf16.mxu0 0
      %365 = vmatpush1.bf16.msra.mxu0 0
      %366 = vmatprep.subr.bf16.mxu0 0
      %367 = vmatpush1.bf16.msra.mxu0 0
      %368 = vmatprep.subr.bf16.mxu0 0
      %369 = vmatpush1.bf16.msra.mxu0 0
      %370 = vmatprep.mubr.bf16.mxu0 0
      %371 = vmatmul.mubr.bf16.gmra.mrb[0].mxu0 %v265
      %v372 = vpop.f32.mrb[0].mxu0
      %v373 = vadd.f32 %v288, %v372
      %v374 = vpop.f32.mrb[0].mxu0
      %v375 = vpop.f32.mrb[0].mxu0
      %v376 = vadd.f32 %v288, %v375
      %v377 = vpop.f32.mrb[0].mxu0
      %378 = vmatprep.mubr.bf16.mxu0 0
      %379 = vmatmul.mubr.bf16.gmra.mrb[0].mxu0 %v266
      %v380 = vpop.f32.mrb[0].mxu0
      %v381 = vadd.f32 %v288, %v380
      %v382 = vpop.f32.mrb[0].mxu0
      %v383 = vpop.f32.mrb[0].mxu0
      %v384 = vadd.f32 %v288, %v383
      %v385 = vpop.f32.mrb[0].mxu0
      %386 = vdwg.mxu0
      %387 = vst [vmem:[#allocation3] sm:$0xff] %v373
      %388 = vst [vmem:[#allocation3 + $0x8] sm:$0xff] %v376
      %389 = vst [vmem:[#allocation3 + $0x10] sm:$0xff] %v381
      %390 = vst [vmem:[#allocation3 + $0x18] sm:$0xff] %v384
    $region29: #{style_encoder_forward.5} parent=1 // pred_fallthru
      _
    // Predicated region
    $region30: #{style_encoder_forward.5} parent=1 // pred_check
      _
    $region31: #{style_encoder_forward.5} parent=1 // pred_check_branch
      %392 = sbr.rel (0) target = $region33
    $region32: #{style_encoder_forward.5} parent=1 // pred_region
      %s394 = ssub.s32 512, 512
      %395 = vsyncadd [#allocation4], %s394
      %s396 = sshll.u32 [#allocation3], 4
      %s397 = int_to_ptr.vmem [resolvable:$true] %s396
      %402 = dma.vmem_to_hbm [thread:$0]  %s397, 512, %s5, [#allocation4], 128, 128, 8
    $region33: #{style_encoder_forward.5} parent=1 // pred_fallthru
      _
    // Predicated region
    $region34: #{style_encoder_forward.5} parent=1 // pred_check
      _
    $region35: #{style_encoder_forward.5} parent=1 // pred_check_branch
      %404 = sbr.rel (0) target = $region37
    $region36: #{style_encoder_forward.5} parent=1 // pred_region
      %405 = dma.done [#allocation4], 512
    $region37: #{style_encoder_forward.5} parent=1 // pred_fallthru
      _
    %406 = vsyncpa [#allocation4], 1

</llo_original>
